<compile_context>
chip_gen: v5e
topology: v5e:2x2
jax: 0.10.0
libtpu: 0.0.40
codegen_flags: <defaults>
</compile_context>

<pallas_src>
import jax
import jax.numpy as jnp
import numpy as np
from jax import lax
from jax.experimental import pallas as pl
from jax.experimental.pallas import tpu as pltpu


# ----------------------------- fused Pallas kernel -----------------------------

def _cnnmnist_kernel(x_ref, w1_ref, b1_ref, w2_ref, b2_ref,
                     wf1_ref, bf1_ref, wf2_ref, bf2_ref, out_ref):
    """One TB-image tile per grid step.

    x_ref block: (28, TB, 28)  -> (H, batch, W); batch on sublanes, W on lanes.
    """
    f32 = jnp.float32
    TB = x_ref.shape[1]
    x = x_ref[...]                                               # (28, TB, 28)

    # ---- conv1 5x5 (+folded BN1) as ONE banded GEMM on the MXU ----
    # LHS rows = (oh, b); lane axis = (kh, iw).  RHS is W-banded, columns
    # ordered (w-parity, oc, ow//2) so the W-pool below is a max of halves.
    lhs1 = jnp.concatenate([x[k:k + 24] for k in range(5)], axis=-1)   # (24, TB, 140)
    out1 = jnp.dot(lhs1.reshape(24 * TB, 140), w1_ref[...],
                   preferred_element_type=f32)                         # (24*TB, 240)
    out1 = out1.reshape(24, TB, 240)

    # ---- maxpool 2x2 -> +bias -> ReLU (per-channel bias commutes with max) ----
    h1 = []
    for j in range(12):
        m = jnp.maximum(out1[2 * j], out1[2 * j + 1])           # H-pool  (TB, 240)
        m = jnp.maximum(m[:, :120], m[:, 120:])                 # W-pool  (TB, 120)
        h1.append(jnp.maximum(m + b1_ref[...], 0.0))            # bias + ReLU
    h1 = jnp.stack(h1, axis=0)                                  # (12, TB, 120) lanes=(ic, w)

    # ---- conv2 5x5 (+folded BN2) as ONE banded GEMM on the MXU ----
    lhs2 = jnp.concatenate([h1[kh:kh + 8] for kh in range(5)], axis=-1)  # (8, TB, 600)
    out2 = jnp.dot(lhs2.reshape(8 * TB, 600), w2_ref[...],
                   preferred_element_type=f32)                           # (8*TB, 160)
    out2 = out2.reshape(8, TB, 160)                              # lanes=(parity, oc2, ow//2)

    # ---- maxpool 2x2 + bias + ReLU fused with fc1 (dropout = identity, eval) ----
    acc = jnp.zeros((TB, 50), f32) + bf1_ref[...]
    for h in range(4):
        m = jnp.maximum(out2[2 * h], out2[2 * h + 1])           # H-pool  (TB, 160)
        m = jnp.maximum(m[:, :80], m[:, 80:])                   # W-pool  (TB, 80) lanes=(c, w)
        m = jnp.maximum(m + b2_ref[...], 0.0)                   # bias + ReLU
        acc = acc + jnp.dot(m, wf1_ref[h], preferred_element_type=f32)  # (TB, 50)
    hfc = jnp.maximum(acc, 0.0)                                 # fc1 ReLU

    # ---- fc + numerically stable log_softmax ----
    logits = jnp.dot(hfc, wf2_ref[...], preferred_element_type=f32) + bf2_ref[...]
    mx = jnp.max(logits, axis=-1, keepdims=True)
    s = logits - mx
    lse = jnp.log(jnp.sum(jnp.exp(s), axis=-1, keepdims=True))
    out_ref[...] = s - lse                                      # (TB, 10)


# ----------------------------- wrapper -----------------------------

def cnnmnist_forward(x_nchw, kp, tb=128):
    B = x_nchw.shape[0]
    TB = tb if B >= tb else max(8, -(-B // 8) * 8)              # TB % 8 == 0
    Bp = -(-B // TB) * TB

    x = x_nchw.reshape(B, 28, 28)                               # C=1 -> free squeeze
    if Bp != B:
        x = jnp.pad(x, ((0, Bp - B), (0, 0), (0, 0)))
    x = jnp.transpose(x, (1, 0, 2))                             # (28, Bp, 28): batch on sublanes

    out = pl.pallas_call(
        _cnnmnist_kernel,
        out_shape=jax.ShapeDtypeStruct((Bp, 10), jnp.float32),
        grid=(Bp // TB,),
        in_specs=[
            pl.BlockSpec((28, TB, 28), lambda i: (0, i, 0)),
            # weights / biases: constant block index -> resident in VMEM
            pl.BlockSpec((140, 240), lambda i: (0, 0)),
            pl.BlockSpec((1, 120),   lambda i: (0, 0)),
            pl.BlockSpec((600, 160), lambda i: (0, 0)),
            pl.BlockSpec((1, 80),    lambda i: (0, 0)),
            pl.BlockSpec((4, 80, 50), lambda i: (0, 0, 0)),
            pl.BlockSpec((1, 50),    lambda i: (0, 0)),
            pl.BlockSpec((50, 10),   lambda i: (0, 0)),
            pl.BlockSpec((1, 10),    lambda i: (0, 0)),
        ],
        out_specs=pl.BlockSpec((TB, 10), lambda i: (i, 0)),
        compiler_params=pltpu.CompilerParams(
            dimension_semantics=("parallel",),          # batch tiles across TCs (v7x)
            vmem_limit_bytes=48 * 1024 * 1024),         # same TB fits v5e/v6e/v7x
    )(x, kp["w1"], kp["b1"], kp["w2"], kp["b2"],
      kp["wf1"], kp["bf1"], kp["wf2"], kp["bf2"])
    return out[:B]


# ----------------------------- host-side parameter prep -----------------------------

def prepare_kernel_params(p, eps=1e-5):
    """Fold eval-mode BN into conv weights and build banded GEMM weights."""

    def fold_bn(w, b, g, beta, m, v):
        s = np.asarray(g) / np.sqrt(np.asarray(v) + eps)
        return (np.asarray(w) * s[:, None, None, None],
                (np.asarray(b) - np.asarray(m)) * s + np.asarray(beta))

    w1f, b1f = fold_bn(p["conv1_w"], p["conv1_b"],
                       p["bn1_g"], p["bn1_b"], p["bn1_m"], p["bn1_v"])
    w2f, b2f = fold_bn(p["conv2_w"], p["conv2_b"],
                       p["bn2_g"], p["bn2_b"], p["bn2_m"], p["bn2_v"])

    # conv1 banded RHS: rows (kh, iw) = kh*28+iw ; cols (parity, oc, ow//2).
    w1band = np.zeros((140, 240), np.float32)
    for kh in range(5):
        for kw in range(5):
            for ow in range(24):
                par, j = ow % 2, ow // 2
                c0 = par * 120 + j
                w1band[kh * 28 + ow + kw, c0:c0 + 120:12] = w1f[:, 0, kh, kw]

    # conv2 banded RHS: rows (kh, ic, jw) = kh*120+ic*12+jw ; cols (parity, oc2, ow//2).
    w2band = np.zeros((600, 160), np.float32)
    for kh in range(5):
        for kw in range(5):
            for ow in range(8):
                par, m = ow % 2, ow // 2
                c0 = par * 80 + m
                for ic in range(10):
                    w2band[kh * 120 + ic * 12 + ow + kw, c0:c0 + 80:4] = w2f[:, ic, kh, kw]

    # fc1: fold PyTorch (c, h, w) flatten order into a (h, c*4+w, out) weight stack.
    wf1 = np.asarray(p["fc1_w"]).reshape(50, 20, 4, 4)            # (n, c, h, w)
    wf1 = np.transpose(wf1, (2, 1, 3, 0)).reshape(4, 80, 50)      # (h, c*4+w, n)

    return {
        "w1": jnp.asarray(w1band),
        "b1": jnp.asarray(np.repeat(b1f, 12).reshape(1, 120)),    # lanes = (oc, w)
        "w2": jnp.asarray(w2band),
        "b2": jnp.asarray(np.repeat(b2f, 4).reshape(1, 80)),      # lanes = (oc2, w)
        "wf1": jnp.asarray(wf1),
        "bf1": jnp.asarray(np.asarray(p["fc1_b"]).reshape(1, 50)),
        "wf2": jnp.asarray(np.transpose(np.asarray(p["fc_w"]))),
        "bf2": jnp.asarray(np.asarray(p["fc_b"]).reshape(1, 10)),
    }


# ----------------------------- pure-JAX reference (eval mode) -----------------------------

def cnnmnist_reference(x, p, eps=1e-5):
    dn = ("NCHW", "OIHW", "NCHW")

    def bn(h, g, b, m, v):
        r = lambda a: a.reshape(1, -1, 1, 1)
        return (h - r(m)) / jnp.sqrt(r(v) + eps) * r(g) + r(b)

    h = lax.conv_general_dilated(x, p["conv1_w"], (1, 1), ((0, 0), (0, 0)),
                                 dimension_numbers=dn)
    h = h + p["conv1_b"].reshape(1, -1, 1, 1)
    h = bn(h, p["bn1_g"], p["bn1_b"], p["bn1_m"], p["bn1_v"])
    h = lax.reduce_window(h, -jnp.inf, lax.max, (1, 1, 2, 2), (1, 1, 2, 2), "VALID")
    h = jax.nn.relu(h)

    h = lax.conv_general_dilated(h, p["conv2_w"], (1, 1), ((0, 0), (0, 0)),
                                 dimension_numbers=dn)
    h = h + p["conv2_b"].reshape(1, -1, 1, 1)
    h = bn(h, p["bn2_g"], p["bn2_b"], p["bn2_m"], p["bn2_v"])
    h = lax.reduce_window(h, -jnp.inf, lax.max, (1, 1, 2, 2), (1, 1, 2, 2), "VALID")
    h = jax.nn.relu(h)

    h = h.reshape(h.shape[0], -1)                       # (B, 320), NCHW flatten
    h = jax.nn.relu(h @ p["fc1_w"].T + p["fc1_b"])
    # dropout: eval mode -> identity
    logits = h @ p["fc_w"].T + p["fc_b"]
    return jax.nn.log_softmax(logits, axis=1)


# ----------------------------- params -----------------------------

def init_params(key):
    ks = jax.random.split(key, 16)
    n = lambda k, s, sc: sc * jax.random.normal(k, s, jnp.float32)
    u = lambda k, s: jax.random.uniform(k, s, jnp.float32, 0.5, 1.5)
    return {
        "conv1_w": n(ks[0], (10, 1, 5, 5), 0.2),
        "conv1_b": n(ks[1], (10,), 0.05),
        "bn1_g": 1.0 + n(ks[2], (10,), 0.1),
        "bn1_b": n(ks[3], (10,), 0.1),
        "bn1_m": n(ks[4], (10,), 0.1),
        "bn1_v": u(ks[5], (10,)),
        "conv2_w": n(ks[6], (20, 10, 5, 5), 0.08),
        "conv2_b": n(ks[7], (20,), 0.05),
        "bn2_g": 1.0 + n(ks[8], (20,), 0.1),
        "bn2_b": n(ks[9], (20,), 0.1),
        "bn2_m": n(ks[10], (20,), 0.1),
        "bn2_v": u(ks[11], (20,)),
        "fc1_w": n(ks[12], (50, 320), 0.05),   # PyTorch nn.Linear layout (out, in)
        "fc1_b": n(ks[13], (50,), 0.05),
        "fc_w":  n(ks[14], (10, 50), 0.1),
        "fc_b":  n(ks[15], (10,), 0.05),
    }


if __name__ == "__main__":
    key = jax.random.PRNGKey(0)
    kx, kp_key = jax.random.split(key)
    # MNIST-shaped input dictated by fc1 = 20*4*4 = 320.
    x = jax.random.normal(kx, (2, 1, 28, 28), jnp.float32)
    params = init_params(kp_key)
    kparams = prepare_kernel_params(params)            # one-time host-side prep

    out = jax.block_until_ready(jax.jit(cnnmnist_forward)(x, kparams))
    ref = jax.block_until_ready(jax.jit(cnnmnist_reference)(x, params))

    assert out.shape == (2, 10)
    assert jnp.allclose(out, ref, atol=5e-4, rtol=5e-4), \
        "Pallas cnnmnist mismatch vs JAX reference"
    print("KERNEL_OK")
</pallas_src>

<mosaic_0001>
module attributes {stable_mosaic.version = 11 : i64} {
  func.func @_cnnmnist_kernel(%arg0: i32, %arg1: memref<28x8x28xf32, #tpu.memory_space<vmem>>, %arg2: memref<140x240xf32, #tpu.memory_space<vmem>>, %arg3: memref<1x120xf32, #tpu.memory_space<vmem>>, %arg4: memref<600x160xf32, #tpu.memory_space<vmem>>, %arg5: memref<1x80xf32, #tpu.memory_space<vmem>>, %arg6: memref<4x80x50xf32, #tpu.memory_space<vmem>>, %arg7: memref<1x50xf32, #tpu.memory_space<vmem>>, %arg8: memref<50x10xf32, #tpu.memory_space<vmem>>, %arg9: memref<1x10xf32, #tpu.memory_space<vmem>>, %arg10: memref<8x10xf32, #tpu.memory_space<vmem>>) attributes {dimension_semantics = [#tpu.dimension_semantics<parallel>], iteration_bounds = array<i64: 1>, scalar_prefetch = 0 : i64, scratch_operands = 0 : i64, tpu.core_type = #tpu.core_type<tc>, window_params = [{transform_indices = @transform_0, window_bounds = array<i64: 28, 8, 28>}, {pipeline_mode = #tpu.pipeline_mode<synchronous>, transform_indices = @transform_1, window_bounds = array<i64: 140, 240>}, {pipeline_mode = #tpu.pipeline_mode<synchronous>, transform_indices = @transform_2, window_bounds = array<i64: 1, 120>}, {pipeline_mode = #tpu.pipeline_mode<synchronous>, transform_indices = @transform_3, window_bounds = array<i64: 600, 160>}, {pipeline_mode = #tpu.pipeline_mode<synchronous>, transform_indices = @transform_4, window_bounds = array<i64: 1, 80>}, {pipeline_mode = #tpu.pipeline_mode<synchronous>, transform_indices = @transform_5, window_bounds = array<i64: 4, 80, 50>}, {pipeline_mode = #tpu.pipeline_mode<synchronous>, transform_indices = @transform_6, window_bounds = array<i64: 1, 50>}, {pipeline_mode = #tpu.pipeline_mode<synchronous>, transform_indices = @transform_7, window_bounds = array<i64: 50, 10>}, {pipeline_mode = #tpu.pipeline_mode<synchronous>, transform_indices = @transform_8, window_bounds = array<i64: 1, 10>}, {transform_indices = @transform_9, window_bounds = array<i64: 8, 10>}]} {
    %c0 = arith.constant 0 : index
    %c0_0 = arith.constant 0 : index
    %c0_1 = arith.constant 0 : index
    %0 = vector.load %arg1[%c0, %c0_0, %c0_1] : memref<28x8x28xf32, #tpu.memory_space<vmem>>, vector<28x8x28xf32>
    %1 = vector.extract_strided_slice %0 {offsets = [0, 0, 0], sizes = [24, 8, 28], strides = [1, 1, 1]} : vector<28x8x28xf32> to vector<24x8x28xf32>
    %2 = vector.extract_strided_slice %0 {offsets = [1, 0, 0], sizes = [24, 8, 28], strides = [1, 1, 1]} : vector<28x8x28xf32> to vector<24x8x28xf32>
    %3 = vector.extract_strided_slice %0 {offsets = [2, 0, 0], sizes = [24, 8, 28], strides = [1, 1, 1]} : vector<28x8x28xf32> to vector<24x8x28xf32>
    %4 = vector.extract_strided_slice %0 {offsets = [3, 0, 0], sizes = [24, 8, 28], strides = [1, 1, 1]} : vector<28x8x28xf32> to vector<24x8x28xf32>
    %5 = vector.extract_strided_slice %0 {offsets = [4, 0, 0], sizes = [24, 8, 28], strides = [1, 1, 1]} : vector<28x8x28xf32> to vector<24x8x28xf32>
    %6 = tpu.concatenate %1, %2, %3, %4, %5 in 2 : vector<24x8x28xf32>, vector<24x8x28xf32>, vector<24x8x28xf32>, vector<24x8x28xf32>, vector<24x8x28xf32> -> vector<24x8x140xf32>
    %7 = vector.shape_cast %6 : vector<24x8x140xf32> to vector<192x140xf32>
    %c0_2 = arith.constant 0 : index
    %c0_3 = arith.constant 0 : index
    %8 = vector.load %arg2[%c0_2, %c0_3] : memref<140x240xf32, #tpu.memory_space<vmem>>, vector<140x240xf32>
    %cst = arith.constant dense<0.000000e+00> : vector<192x240xf32>
    %9 = tpu.matmul %7, %8, %cst {dimension_numbers = #tpu.dot_dimension_numbers<[1], [0], [0], [1], [0, 0, 1, 1], [], []>} : vector<192x140xf32>, vector<140x240xf32>, vector<192x240xf32> -> vector<192x240xf32>
    %10 = vector.shape_cast %9 : vector<192x240xf32> to vector<24x8x240xf32>
    %11 = vector.extract_strided_slice %10 {offsets = [0, 0, 0], sizes = [1, 8, 240], strides = [1, 1, 1]} : vector<24x8x240xf32> to vector<1x8x240xf32>
    %12 = vector.shape_cast %11 : vector<1x8x240xf32> to vector<8x240xf32>
    %13 = vector.extract_strided_slice %10 {offsets = [1, 0, 0], sizes = [1, 8, 240], strides = [1, 1, 1]} : vector<24x8x240xf32> to vector<1x8x240xf32>
    %14 = vector.shape_cast %13 : vector<1x8x240xf32> to vector<8x240xf32>
    %15 = arith.maximumf %12, %14 : vector<8x240xf32>
    %16 = vector.extract_strided_slice %15 {offsets = [0, 0], sizes = [8, 120], strides = [1, 1]} : vector<8x240xf32> to vector<8x120xf32>
    %17 = vector.extract_strided_slice %15 {offsets = [0, 120], sizes = [8, 120], strides = [1, 1]} : vector<8x240xf32> to vector<8x120xf32>
    %18 = arith.maximumf %16, %17 : vector<8x120xf32>
    %c0_4 = arith.constant 0 : index
    %c0_5 = arith.constant 0 : index
    %19 = vector.load %arg3[%c0_4, %c0_5] : memref<1x120xf32, #tpu.memory_space<vmem>>, vector<1x120xf32>
    %20 = vector.broadcast %19 : vector<1x120xf32> to vector<8x120xf32>
    %21 = arith.addf %18, %20 : vector<8x120xf32>
    %cst_6 = arith.constant 0.000000e+00 : f32
    %22 = vector.broadcast %cst_6 : f32 to vector<8x120xf32>
    %23 = arith.maximumf %21, %22 : vector<8x120xf32>
    %24 = vector.extract_strided_slice %10 {offsets = [2, 0, 0], sizes = [1, 8, 240], strides = [1, 1, 1]} : vector<24x8x240xf32> to vector<1x8x240xf32>
    %25 = vector.shape_cast %24 : vector<1x8x240xf32> to vector<8x240xf32>
    %26 = vector.extract_strided_slice %10 {offsets = [3, 0, 0], sizes = [1, 8, 240], strides = [1, 1, 1]} : vector<24x8x240xf32> to vector<1x8x240xf32>
    %27 = vector.shape_cast %26 : vector<1x8x240xf32> to vector<8x240xf32>
    %28 = arith.maximumf %25, %27 : vector<8x240xf32>
    %29 = vector.extract_strided_slice %28 {offsets = [0, 0], sizes = [8, 120], strides = [1, 1]} : vector<8x240xf32> to vector<8x120xf32>
    %30 = vector.extract_strided_slice %28 {offsets = [0, 120], sizes = [8, 120], strides = [1, 1]} : vector<8x240xf32> to vector<8x120xf32>
    %31 = arith.maximumf %29, %30 : vector<8x120xf32>
    %c0_7 = arith.constant 0 : index
    %c0_8 = arith.constant 0 : index
    %32 = vector.load %arg3[%c0_7, %c0_8] : memref<1x120xf32, #tpu.memory_space<vmem>>, vector<1x120xf32>
    %33 = vector.broadcast %32 : vector<1x120xf32> to vector<8x120xf32>
    %34 = arith.addf %31, %33 : vector<8x120xf32>
    %cst_9 = arith.constant 0.000000e+00 : f32
    %35 = vector.broadcast %cst_9 : f32 to vector<8x120xf32>
    %36 = arith.maximumf %34, %35 : vector<8x120xf32>
    %37 = vector.extract_strided_slice %10 {offsets = [4, 0, 0], sizes = [1, 8, 240], strides = [1, 1, 1]} : vector<24x8x240xf32> to vector<1x8x240xf32>
    %38 = vector.shape_cast %37 : vector<1x8x240xf32> to vector<8x240xf32>
    %39 = vector.extract_strided_slice %10 {offsets = [5, 0, 0], sizes = [1, 8, 240], strides = [1, 1, 1]} : vector<24x8x240xf32> to vector<1x8x240xf32>
    %40 = vector.shape_cast %39 : vector<1x8x240xf32> to vector<8x240xf32>
    %41 = arith.maximumf %38, %40 : vector<8x240xf32>
    %42 = vector.extract_strided_slice %41 {offsets = [0, 0], sizes = [8, 120], strides = [1, 1]} : vector<8x240xf32> to vector<8x120xf32>
    %43 = vector.extract_strided_slice %41 {offsets = [0, 120], sizes = [8, 120], strides = [1, 1]} : vector<8x240xf32> to vector<8x120xf32>
    %44 = arith.maximumf %42, %43 : vector<8x120xf32>
    %c0_10 = arith.constant 0 : index
    %c0_11 = arith.constant 0 : index
    %45 = vector.load %arg3[%c0_10, %c0_11] : memref<1x120xf32, #tpu.memory_space<vmem>>, vector<1x120xf32>
    %46 = vector.broadcast %45 : vector<1x120xf32> to vector<8x120xf32>
    %47 = arith.addf %44, %46 : vector<8x120xf32>
    %cst_12 = arith.constant 0.000000e+00 : f32
    %48 = vector.broadcast %cst_12 : f32 to vector<8x120xf32>
    %49 = arith.maximumf %47, %48 : vector<8x120xf32>
    %50 = vector.extract_strided_slice %10 {offsets = [6, 0, 0], sizes = [1, 8, 240], strides = [1, 1, 1]} : vector<24x8x240xf32> to vector<1x8x240xf32>
    %51 = vector.shape_cast %50 : vector<1x8x240xf32> to vector<8x240xf32>
    %52 = vector.extract_strided_slice %10 {offsets = [7, 0, 0], sizes = [1, 8, 240], strides = [1, 1, 1]} : vector<24x8x240xf32> to vector<1x8x240xf32>
    %53 = vector.shape_cast %52 : vector<1x8x240xf32> to vector<8x240xf32>
    %54 = arith.maximumf %51, %53 : vector<8x240xf32>
    %55 = vector.extract_strided_slice %54 {offsets = [0, 0], sizes = [8, 120], strides = [1, 1]} : vector<8x240xf32> to vector<8x120xf32>
    %56 = vector.extract_strided_slice %54 {offsets = [0, 120], sizes = [8, 120], strides = [1, 1]} : vector<8x240xf32> to vector<8x120xf32>
    %57 = arith.maximumf %55, %56 : vector<8x120xf32>
    %c0_13 = arith.constant 0 : index
    %c0_14 = arith.constant 0 : index
    %58 = vector.load %arg3[%c0_13, %c0_14] : memref<1x120xf32, #tpu.memory_space<vmem>>, vector<1x120xf32>
    %59 = vector.broadcast %58 : vector<1x120xf32> to vector<8x120xf32>
    %60 = arith.addf %57, %59 : vector<8x120xf32>
    %cst_15 = arith.constant 0.000000e+00 : f32
    %61 = vector.broadcast %cst_15 : f32 to vector<8x120xf32>
    %62 = arith.maximumf %60, %61 : vector<8x120xf32>
    %63 = vector.extract_strided_slice %10 {offsets = [8, 0, 0], sizes = [1, 8, 240], strides = [1, 1, 1]} : vector<24x8x240xf32> to vector<1x8x240xf32>
    %64 = vector.shape_cast %63 : vector<1x8x240xf32> to vector<8x240xf32>
    %65 = vector.extract_strided_slice %10 {offsets = [9, 0, 0], sizes = [1, 8, 240], strides = [1, 1, 1]} : vector<24x8x240xf32> to vector<1x8x240xf32>
    %66 = vector.shape_cast %65 : vector<1x8x240xf32> to vector<8x240xf32>
    %67 = arith.maximumf %64, %66 : vector<8x240xf32>
    %68 = vector.extract_strided_slice %67 {offsets = [0, 0], sizes = [8, 120], strides = [1, 1]} : vector<8x240xf32> to vector<8x120xf32>
    %69 = vector.extract_strided_slice %67 {offsets = [0, 120], sizes = [8, 120], strides = [1, 1]} : vector<8x240xf32> to vector<8x120xf32>
    %70 = arith.maximumf %68, %69 : vector<8x120xf32>
    %c0_16 = arith.constant 0 : index
    %c0_17 = arith.constant 0 : index
    %71 = vector.load %arg3[%c0_16, %c0_17] : memref<1x120xf32, #tpu.memory_space<vmem>>, vector<1x120xf32>
    %72 = vector.broadcast %71 : vector<1x120xf32> to vector<8x120xf32>
    %73 = arith.addf %70, %72 : vector<8x120xf32>
    %cst_18 = arith.constant 0.000000e+00 : f32
    %74 = vector.broadcast %cst_18 : f32 to vector<8x120xf32>
    %75 = arith.maximumf %73, %74 : vector<8x120xf32>
    %76 = vector.extract_strided_slice %10 {offsets = [10, 0, 0], sizes = [1, 8, 240], strides = [1, 1, 1]} : vector<24x8x240xf32> to vector<1x8x240xf32>
    %77 = vector.shape_cast %76 : vector<1x8x240xf32> to vector<8x240xf32>
    %78 = vector.extract_strided_slice %10 {offsets = [11, 0, 0], sizes = [1, 8, 240], strides = [1, 1, 1]} : vector<24x8x240xf32> to vector<1x8x240xf32>
    %79 = vector.shape_cast %78 : vector<1x8x240xf32> to vector<8x240xf32>
    %80 = arith.maximumf %77, %79 : vector<8x240xf32>
    %81 = vector.extract_strided_slice %80 {offsets = [0, 0], sizes = [8, 120], strides = [1, 1]} : vector<8x240xf32> to vector<8x120xf32>
    %82 = vector.extract_strided_slice %80 {offsets = [0, 120], sizes = [8, 120], strides = [1, 1]} : vector<8x240xf32> to vector<8x120xf32>
    %83 = arith.maximumf %81, %82 : vector<8x120xf32>
    %c0_19 = arith.constant 0 : index
    %c0_20 = arith.constant 0 : index
    %84 = vector.load %arg3[%c0_19, %c0_20] : memref<1x120xf32, #tpu.memory_space<vmem>>, vector<1x120xf32>
    %85 = vector.broadcast %84 : vector<1x120xf32> to vector<8x120xf32>
    %86 = arith.addf %83, %85 : vector<8x120xf32>
    %cst_21 = arith.constant 0.000000e+00 : f32
    %87 = vector.broadcast %cst_21 : f32 to vector<8x120xf32>
    %88 = arith.maximumf %86, %87 : vector<8x120xf32>
    %89 = vector.extract_strided_slice %10 {offsets = [12, 0, 0], sizes = [1, 8, 240], strides = [1, 1, 1]} : vector<24x8x240xf32> to vector<1x8x240xf32>
    %90 = vector.shape_cast %89 : vector<1x8x240xf32> to vector<8x240xf32>
    %91 = vector.extract_strided_slice %10 {offsets = [13, 0, 0], sizes = [1, 8, 240], strides = [1, 1, 1]} : vector<24x8x240xf32> to vector<1x8x240xf32>
    %92 = vector.shape_cast %91 : vector<1x8x240xf32> to vector<8x240xf32>
    %93 = arith.maximumf %90, %92 : vector<8x240xf32>
    %94 = vector.extract_strided_slice %93 {offsets = [0, 0], sizes = [8, 120], strides = [1, 1]} : vector<8x240xf32> to vector<8x120xf32>
    %95 = vector.extract_strided_slice %93 {offsets = [0, 120], sizes = [8, 120], strides = [1, 1]} : vector<8x240xf32> to vector<8x120xf32>
    %96 = arith.maximumf %94, %95 : vector<8x120xf32>
    %c0_22 = arith.constant 0 : index
    %c0_23 = arith.constant 0 : index
    %97 = vector.load %arg3[%c0_22, %c0_23] : memref<1x120xf32, #tpu.memory_space<vmem>>, vector<1x120xf32>
    %98 = vector.broadcast %97 : vector<1x120xf32> to vector<8x120xf32>
    %99 = arith.addf %96, %98 : vector<8x120xf32>
    %cst_24 = arith.constant 0.000000e+00 : f32
    %100 = vector.broadcast %cst_24 : f32 to vector<8x120xf32>
    %101 = arith.maximumf %99, %100 : vector<8x120xf32>
    %102 = vector.extract_strided_slice %10 {offsets = [14, 0, 0], sizes = [1, 8, 240], strides = [1, 1, 1]} : vector<24x8x240xf32> to vector<1x8x240xf32>
    %103 = vector.shape_cast %102 : vector<1x8x240xf32> to vector<8x240xf32>
    %104 = vector.extract_strided_slice %10 {offsets = [15, 0, 0], sizes = [1, 8, 240], strides = [1, 1, 1]} : vector<24x8x240xf32> to vector<1x8x240xf32>
    %105 = vector.shape_cast %104 : vector<1x8x240xf32> to vector<8x240xf32>
    %106 = arith.maximumf %103, %105 : vector<8x240xf32>
    %107 = vector.extract_strided_slice %106 {offsets = [0, 0], sizes = [8, 120], strides = [1, 1]} : vector<8x240xf32> to vector<8x120xf32>
    %108 = vector.extract_strided_slice %106 {offsets = [0, 120], sizes = [8, 120], strides = [1, 1]} : vector<8x240xf32> to vector<8x120xf32>
    %109 = arith.maximumf %107, %108 : vector<8x120xf32>
    %c0_25 = arith.constant 0 : index
    %c0_26 = arith.constant 0 : index
    %110 = vector.load %arg3[%c0_25, %c0_26] : memref<1x120xf32, #tpu.memory_space<vmem>>, vector<1x120xf32>
    %111 = vector.broadcast %110 : vector<1x120xf32> to vector<8x120xf32>
    %112 = arith.addf %109, %111 : vector<8x120xf32>
    %cst_27 = arith.constant 0.000000e+00 : f32
    %113 = vector.broadcast %cst_27 : f32 to vector<8x120xf32>
    %114 = arith.maximumf %112, %113 : vector<8x120xf32>
    %115 = vector.extract_strided_slice %10 {offsets = [16, 0, 0], sizes = [1, 8, 240], strides = [1, 1, 1]} : vector<24x8x240xf32> to vector<1x8x240xf32>
    %116 = vector.shape_cast %115 : vector<1x8x240xf32> to vector<8x240xf32>
    %117 = vector.extract_strided_slice %10 {offsets = [17, 0, 0], sizes = [1, 8, 240], strides = [1, 1, 1]} : vector<24x8x240xf32> to vector<1x8x240xf32>
    %118 = vector.shape_cast %117 : vector<1x8x240xf32> to vector<8x240xf32>
    %119 = arith.maximumf %116, %118 : vector<8x240xf32>
    %120 = vector.extract_strided_slice %119 {offsets = [0, 0], sizes = [8, 120], strides = [1, 1]} : vector<8x240xf32> to vector<8x120xf32>
    %121 = vector.extract_strided_slice %119 {offsets = [0, 120], sizes = [8, 120], strides = [1, 1]} : vector<8x240xf32> to vector<8x120xf32>
    %122 = arith.maximumf %120, %121 : vector<8x120xf32>
    %c0_28 = arith.constant 0 : index
    %c0_29 = arith.constant 0 : index
    %123 = vector.load %arg3[%c0_28, %c0_29] : memref<1x120xf32, #tpu.memory_space<vmem>>, vector<1x120xf32>
    %124 = vector.broadcast %123 : vector<1x120xf32> to vector<8x120xf32>
    %125 = arith.addf %122, %124 : vector<8x120xf32>
    %cst_30 = arith.constant 0.000000e+00 : f32
    %126 = vector.broadcast %cst_30 : f32 to vector<8x120xf32>
    %127 = arith.maximumf %125, %126 : vector<8x120xf32>
    %128 = vector.extract_strided_slice %10 {offsets = [18, 0, 0], sizes = [1, 8, 240], strides = [1, 1, 1]} : vector<24x8x240xf32> to vector<1x8x240xf32>
    %129 = vector.shape_cast %128 : vector<1x8x240xf32> to vector<8x240xf32>
    %130 = vector.extract_strided_slice %10 {offsets = [19, 0, 0], sizes = [1, 8, 240], strides = [1, 1, 1]} : vector<24x8x240xf32> to vector<1x8x240xf32>
    %131 = vector.shape_cast %130 : vector<1x8x240xf32> to vector<8x240xf32>
    %132 = arith.maximumf %129, %131 : vector<8x240xf32>
    %133 = vector.extract_strided_slice %132 {offsets = [0, 0], sizes = [8, 120], strides = [1, 1]} : vector<8x240xf32> to vector<8x120xf32>
    %134 = vector.extract_strided_slice %132 {offsets = [0, 120], sizes = [8, 120], strides = [1, 1]} : vector<8x240xf32> to vector<8x120xf32>
    %135 = arith.maximumf %133, %134 : vector<8x120xf32>
    %c0_31 = arith.constant 0 : index
    %c0_32 = arith.constant 0 : index
    %136 = vector.load %arg3[%c0_31, %c0_32] : memref<1x120xf32, #tpu.memory_space<vmem>>, vector<1x120xf32>
    %137 = vector.broadcast %136 : vector<1x120xf32> to vector<8x120xf32>
    %138 = arith.addf %135, %137 : vector<8x120xf32>
    %cst_33 = arith.constant 0.000000e+00 : f32
    %139 = vector.broadcast %cst_33 : f32 to vector<8x120xf32>
    %140 = arith.maximumf %138, %139 : vector<8x120xf32>
    %141 = vector.extract_strided_slice %10 {offsets = [20, 0, 0], sizes = [1, 8, 240], strides = [1, 1, 1]} : vector<24x8x240xf32> to vector<1x8x240xf32>
    %142 = vector.shape_cast %141 : vector<1x8x240xf32> to vector<8x240xf32>
    %143 = vector.extract_strided_slice %10 {offsets = [21, 0, 0], sizes = [1, 8, 240], strides = [1, 1, 1]} : vector<24x8x240xf32> to vector<1x8x240xf32>
    %144 = vector.shape_cast %143 : vector<1x8x240xf32> to vector<8x240xf32>
    %145 = arith.maximumf %142, %144 : vector<8x240xf32>
    %146 = vector.extract_strided_slice %145 {offsets = [0, 0], sizes = [8, 120], strides = [1, 1]} : vector<8x240xf32> to vector<8x120xf32>
    %147 = vector.extract_strided_slice %145 {offsets = [0, 120], sizes = [8, 120], strides = [1, 1]} : vector<8x240xf32> to vector<8x120xf32>
    %148 = arith.maximumf %146, %147 : vector<8x120xf32>
    %c0_34 = arith.constant 0 : index
    %c0_35 = arith.constant 0 : index
    %149 = vector.load %arg3[%c0_34, %c0_35] : memref<1x120xf32, #tpu.memory_space<vmem>>, vector<1x120xf32>
    %150 = vector.broadcast %149 : vector<1x120xf32> to vector<8x120xf32>
    %151 = arith.addf %148, %150 : vector<8x120xf32>
    %cst_36 = arith.constant 0.000000e+00 : f32
    %152 = vector.broadcast %cst_36 : f32 to vector<8x120xf32>
    %153 = arith.maximumf %151, %152 : vector<8x120xf32>
    %154 = vector.extract_strided_slice %10 {offsets = [22, 0, 0], sizes = [1, 8, 240], strides = [1, 1, 1]} : vector<24x8x240xf32> to vector<1x8x240xf32>
    %155 = vector.shape_cast %154 : vector<1x8x240xf32> to vector<8x240xf32>
    %156 = vector.extract_strided_slice %10 {offsets = [23, 0, 0], sizes = [1, 8, 240], strides = [1, 1, 1]} : vector<24x8x240xf32> to vector<1x8x240xf32>
    %157 = vector.shape_cast %156 : vector<1x8x240xf32> to vector<8x240xf32>
    %158 = arith.maximumf %155, %157 : vector<8x240xf32>
    %159 = vector.extract_strided_slice %158 {offsets = [0, 0], sizes = [8, 120], strides = [1, 1]} : vector<8x240xf32> to vector<8x120xf32>
    %160 = vector.extract_strided_slice %158 {offsets = [0, 120], sizes = [8, 120], strides = [1, 1]} : vector<8x240xf32> to vector<8x120xf32>
    %161 = arith.maximumf %159, %160 : vector<8x120xf32>
    %c0_37 = arith.constant 0 : index
    %c0_38 = arith.constant 0 : index
    %162 = vector.load %arg3[%c0_37, %c0_38] : memref<1x120xf32, #tpu.memory_space<vmem>>, vector<1x120xf32>
    %163 = vector.broadcast %162 : vector<1x120xf32> to vector<8x120xf32>
    %164 = arith.addf %161, %163 : vector<8x120xf32>
    %cst_39 = arith.constant 0.000000e+00 : f32
    %165 = vector.broadcast %cst_39 : f32 to vector<8x120xf32>
    %166 = arith.maximumf %164, %165 : vector<8x120xf32>
    %167 = vector.shape_cast %23 : vector<8x120xf32> to vector<1x8x120xf32>
    %168 = vector.shape_cast %36 : vector<8x120xf32> to vector<1x8x120xf32>
    %169 = vector.shape_cast %49 : vector<8x120xf32> to vector<1x8x120xf32>
    %170 = vector.shape_cast %62 : vector<8x120xf32> to vector<1x8x120xf32>
    %171 = vector.shape_cast %75 : vector<8x120xf32> to vector<1x8x120xf32>
    %172 = vector.shape_cast %88 : vector<8x120xf32> to vector<1x8x120xf32>
    %173 = vector.shape_cast %101 : vector<8x120xf32> to vector<1x8x120xf32>
    %174 = vector.shape_cast %114 : vector<8x120xf32> to vector<1x8x120xf32>
    %175 = vector.shape_cast %127 : vector<8x120xf32> to vector<1x8x120xf32>
    %176 = vector.shape_cast %140 : vector<8x120xf32> to vector<1x8x120xf32>
    %177 = vector.shape_cast %153 : vector<8x120xf32> to vector<1x8x120xf32>
    %178 = vector.shape_cast %166 : vector<8x120xf32> to vector<1x8x120xf32>
    %179 = tpu.concatenate %167, %168, %169, %170, %171, %172, %173, %174, %175, %176, %177, %178 in 0 : vector<1x8x120xf32>, vector<1x8x120xf32>, vector<1x8x120xf32>, vector<1x8x120xf32>, vector<1x8x120xf32>, vector<1x8x120xf32>, vector<1x8x120xf32>, vector<1x8x120xf32>, vector<1x8x120xf32>, vector<1x8x120xf32>, vector<1x8x120xf32>, vector<1x8x120xf32> -> vector<12x8x120xf32>
    %180 = vector.extract_strided_slice %179 {offsets = [0, 0, 0], sizes = [8, 8, 120], strides = [1, 1, 1]} : vector<12x8x120xf32> to vector<8x8x120xf32>
    %181 = vector.extract_strided_slice %179 {offsets = [1, 0, 0], sizes = [8, 8, 120], strides = [1, 1, 1]} : vector<12x8x120xf32> to vector<8x8x120xf32>
    %182 = vector.extract_strided_slice %179 {offsets = [2, 0, 0], sizes = [8, 8, 120], strides = [1, 1, 1]} : vector<12x8x120xf32> to vector<8x8x120xf32>
    %183 = vector.extract_strided_slice %179 {offsets = [3, 0, 0], sizes = [8, 8, 120], strides = [1, 1, 1]} : vector<12x8x120xf32> to vector<8x8x120xf32>
    %184 = vector.extract_strided_slice %179 {offsets = [4, 0, 0], sizes = [8, 8, 120], strides = [1, 1, 1]} : vector<12x8x120xf32> to vector<8x8x120xf32>
    %185 = tpu.concatenate %180, %181, %182, %183, %184 in 2 : vector<8x8x120xf32>, vector<8x8x120xf32>, vector<8x8x120xf32>, vector<8x8x120xf32>, vector<8x8x120xf32> -> vector<8x8x600xf32>
    %186 = vector.shape_cast %185 : vector<8x8x600xf32> to vector<64x600xf32>
    %c0_40 = arith.constant 0 : index
    %c0_41 = arith.constant 0 : index
    %187 = vector.load %arg4[%c0_40, %c0_41] : memref<600x160xf32, #tpu.memory_space<vmem>>, vector<600x160xf32>
    %cst_42 = arith.constant dense<0.000000e+00> : vector<64x160xf32>
    %188 = tpu.matmul %186, %187, %cst_42 {dimension_numbers = #tpu.dot_dimension_numbers<[1], [0], [0], [1], [0, 0, 1, 1], [], []>} : vector<64x600xf32>, vector<600x160xf32>, vector<64x160xf32> -> vector<64x160xf32>
    %189 = vector.shape_cast %188 : vector<64x160xf32> to vector<8x8x160xf32>
    %cst_43 = arith.constant 0.000000e+00 : f32
    %190 = vector.broadcast %cst_43 : f32 to vector<8x50xf32>
    %c0_44 = arith.constant 0 : index
    %c0_45 = arith.constant 0 : index
    %191 = vector.load %arg7[%c0_44, %c0_45] : memref<1x50xf32, #tpu.memory_space<vmem>>, vector<1x50xf32>
    %192 = vector.broadcast %191 : vector<1x50xf32> to vector<8x50xf32>
    %193 = arith.addf %190, %192 : vector<8x50xf32>
    %194 = vector.extract_strided_slice %189 {offsets = [0, 0, 0], sizes = [1, 8, 160], strides = [1, 1, 1]} : vector<8x8x160xf32> to vector<1x8x160xf32>
    %195 = vector.shape_cast %194 : vector<1x8x160xf32> to vector<8x160xf32>
    %196 = vector.extract_strided_slice %189 {offsets = [1, 0, 0], sizes = [1, 8, 160], strides = [1, 1, 1]} : vector<8x8x160xf32> to vector<1x8x160xf32>
    %197 = vector.shape_cast %196 : vector<1x8x160xf32> to vector<8x160xf32>
    %198 = arith.maximumf %195, %197 : vector<8x160xf32>
    %199 = vector.extract_strided_slice %198 {offsets = [0, 0], sizes = [8, 80], strides = [1, 1]} : vector<8x160xf32> to vector<8x80xf32>
    %200 = vector.extract_strided_slice %198 {offsets = [0, 80], sizes = [8, 80], strides = [1, 1]} : vector<8x160xf32> to vector<8x80xf32>
    %201 = arith.maximumf %199, %200 : vector<8x80xf32>
    %c0_46 = arith.constant 0 : index
    %c0_47 = arith.constant 0 : index
    %202 = vector.load %arg5[%c0_46, %c0_47] : memref<1x80xf32, #tpu.memory_space<vmem>>, vector<1x80xf32>
    %203 = vector.broadcast %202 : vector<1x80xf32> to vector<8x80xf32>
    %204 = arith.addf %201, %203 : vector<8x80xf32>
    %cst_48 = arith.constant 0.000000e+00 : f32
    %205 = vector.broadcast %cst_48 : f32 to vector<8x80xf32>
    %206 = arith.maximumf %204, %205 : vector<8x80xf32>
    %c0_49 = arith.constant 0 : index
    %c0_50 = arith.constant 0 : index
    %c0_51 = arith.constant 0 : index
    %207 = vector.load %arg6[%c0_49, %c0_50, %c0_51] : memref<4x80x50xf32, #tpu.memory_space<vmem>>, vector<1x80x50xf32>
    %208 = vector.shape_cast %207 : vector<1x80x50xf32> to vector<80x50xf32>
    %cst_52 = arith.constant dense<0.000000e+00> : vector<8x50xf32>
    %209 = tpu.matmul %206, %208, %cst_52 {dimension_numbers = #tpu.dot_dimension_numbers<[1], [0], [0], [1], [0, 0, 1, 1], [], []>} : vector<8x80xf32>, vector<80x50xf32>, vector<8x50xf32> -> vector<8x50xf32>
    %210 = arith.addf %193, %209 : vector<8x50xf32>
    %211 = vector.extract_strided_slice %189 {offsets = [2, 0, 0], sizes = [1, 8, 160], strides = [1, 1, 1]} : vector<8x8x160xf32> to vector<1x8x160xf32>
    %212 = vector.shape_cast %211 : vector<1x8x160xf32> to vector<8x160xf32>
    %213 = vector.extract_strided_slice %189 {offsets = [3, 0, 0], sizes = [1, 8, 160], strides = [1, 1, 1]} : vector<8x8x160xf32> to vector<1x8x160xf32>
    %214 = vector.shape_cast %213 : vector<1x8x160xf32> to vector<8x160xf32>
    %215 = arith.maximumf %212, %214 : vector<8x160xf32>
    %216 = vector.extract_strided_slice %215 {offsets = [0, 0], sizes = [8, 80], strides = [1, 1]} : vector<8x160xf32> to vector<8x80xf32>
    %217 = vector.extract_strided_slice %215 {offsets = [0, 80], sizes = [8, 80], strides = [1, 1]} : vector<8x160xf32> to vector<8x80xf32>
    %218 = arith.maximumf %216, %217 : vector<8x80xf32>
    %c0_53 = arith.constant 0 : index
    %c0_54 = arith.constant 0 : index
    %219 = vector.load %arg5[%c0_53, %c0_54] : memref<1x80xf32, #tpu.memory_space<vmem>>, vector<1x80xf32>
    %220 = vector.broadcast %219 : vector<1x80xf32> to vector<8x80xf32>
    %221 = arith.addf %218, %220 : vector<8x80xf32>
    %cst_55 = arith.constant 0.000000e+00 : f32
    %222 = vector.broadcast %cst_55 : f32 to vector<8x80xf32>
    %223 = arith.maximumf %221, %222 : vector<8x80xf32>
    %c1 = arith.constant 1 : index
    %c0_56 = arith.constant 0 : index
    %c0_57 = arith.constant 0 : index
    %224 = vector.load %arg6[%c1, %c0_56, %c0_57] : memref<4x80x50xf32, #tpu.memory_space<vmem>>, vector<1x80x50xf32>
    %225 = vector.shape_cast %224 : vector<1x80x50xf32> to vector<80x50xf32>
    %cst_58 = arith.constant dense<0.000000e+00> : vector<8x50xf32>
    %226 = tpu.matmul %223, %225, %cst_58 {dimension_numbers = #tpu.dot_dimension_numbers<[1], [0], [0], [1], [0, 0, 1, 1], [], []>} : vector<8x80xf32>, vector<80x50xf32>, vector<8x50xf32> -> vector<8x50xf32>
    %227 = arith.addf %210, %226 : vector<8x50xf32>
    %228 = vector.extract_strided_slice %189 {offsets = [4, 0, 0], sizes = [1, 8, 160], strides = [1, 1, 1]} : vector<8x8x160xf32> to vector<1x8x160xf32>
    %229 = vector.shape_cast %228 : vector<1x8x160xf32> to vector<8x160xf32>
    %230 = vector.extract_strided_slice %189 {offsets = [5, 0, 0], sizes = [1, 8, 160], strides = [1, 1, 1]} : vector<8x8x160xf32> to vector<1x8x160xf32>
    %231 = vector.shape_cast %230 : vector<1x8x160xf32> to vector<8x160xf32>
    %232 = arith.maximumf %229, %231 : vector<8x160xf32>
    %233 = vector.extract_strided_slice %232 {offsets = [0, 0], sizes = [8, 80], strides = [1, 1]} : vector<8x160xf32> to vector<8x80xf32>
    %234 = vector.extract_strided_slice %232 {offsets = [0, 80], sizes = [8, 80], strides = [1, 1]} : vector<8x160xf32> to vector<8x80xf32>
    %235 = arith.maximumf %233, %234 : vector<8x80xf32>
    %c0_59 = arith.constant 0 : index
    %c0_60 = arith.constant 0 : index
    %236 = vector.load %arg5[%c0_59, %c0_60] : memref<1x80xf32, #tpu.memory_space<vmem>>, vector<1x80xf32>
    %237 = vector.broadcast %236 : vector<1x80xf32> to vector<8x80xf32>
    %238 = arith.addf %235, %237 : vector<8x80xf32>
    %cst_61 = arith.constant 0.000000e+00 : f32
    %239 = vector.broadcast %cst_61 : f32 to vector<8x80xf32>
    %240 = arith.maximumf %238, %239 : vector<8x80xf32>
    %c2 = arith.constant 2 : index
    %c0_62 = arith.constant 0 : index
    %c0_63 = arith.constant 0 : index
    %241 = vector.load %arg6[%c2, %c0_62, %c0_63] : memref<4x80x50xf32, #tpu.memory_space<vmem>>, vector<1x80x50xf32>
    %242 = vector.shape_cast %241 : vector<1x80x50xf32> to vector<80x50xf32>
    %cst_64 = arith.constant dense<0.000000e+00> : vector<8x50xf32>
    %243 = tpu.matmul %240, %242, %cst_64 {dimension_numbers = #tpu.dot_dimension_numbers<[1], [0], [0], [1], [0, 0, 1, 1], [], []>} : vector<8x80xf32>, vector<80x50xf32>, vector<8x50xf32> -> vector<8x50xf32>
    %244 = arith.addf %227, %243 : vector<8x50xf32>
    %245 = vector.extract_strided_slice %189 {offsets = [6, 0, 0], sizes = [1, 8, 160], strides = [1, 1, 1]} : vector<8x8x160xf32> to vector<1x8x160xf32>
    %246 = vector.shape_cast %245 : vector<1x8x160xf32> to vector<8x160xf32>
    %247 = vector.extract_strided_slice %189 {offsets = [7, 0, 0], sizes = [1, 8, 160], strides = [1, 1, 1]} : vector<8x8x160xf32> to vector<1x8x160xf32>
    %248 = vector.shape_cast %247 : vector<1x8x160xf32> to vector<8x160xf32>
    %249 = arith.maximumf %246, %248 : vector<8x160xf32>
    %250 = vector.extract_strided_slice %249 {offsets = [0, 0], sizes = [8, 80], strides = [1, 1]} : vector<8x160xf32> to vector<8x80xf32>
    %251 = vector.extract_strided_slice %249 {offsets = [0, 80], sizes = [8, 80], strides = [1, 1]} : vector<8x160xf32> to vector<8x80xf32>
    %252 = arith.maximumf %250, %251 : vector<8x80xf32>
    %c0_65 = arith.constant 0 : index
    %c0_66 = arith.constant 0 : index
    %253 = vector.load %arg5[%c0_65, %c0_66] : memref<1x80xf32, #tpu.memory_space<vmem>>, vector<1x80xf32>
    %254 = vector.broadcast %253 : vector<1x80xf32> to vector<8x80xf32>
    %255 = arith.addf %252, %254 : vector<8x80xf32>
    %cst_67 = arith.constant 0.000000e+00 : f32
    %256 = vector.broadcast %cst_67 : f32 to vector<8x80xf32>
    %257 = arith.maximumf %255, %256 : vector<8x80xf32>
    %c3 = arith.constant 3 : index
    %c0_68 = arith.constant 0 : index
    %c0_69 = arith.constant 0 : index
    %258 = vector.load %arg6[%c3, %c0_68, %c0_69] : memref<4x80x50xf32, #tpu.memory_space<vmem>>, vector<1x80x50xf32>
    %259 = vector.shape_cast %258 : vector<1x80x50xf32> to vector<80x50xf32>
    %cst_70 = arith.constant dense<0.000000e+00> : vector<8x50xf32>
    %260 = tpu.matmul %257, %259, %cst_70 {dimension_numbers = #tpu.dot_dimension_numbers<[1], [0], [0], [1], [0, 0, 1, 1], [], []>} : vector<8x80xf32>, vector<80x50xf32>, vector<8x50xf32> -> vector<8x50xf32>
    %261 = arith.addf %244, %260 : vector<8x50xf32>
    %cst_71 = arith.constant 0.000000e+00 : f32
    %262 = vector.broadcast %cst_71 : f32 to vector<8x50xf32>
    %263 = arith.maximumf %261, %262 : vector<8x50xf32>
    %c0_72 = arith.constant 0 : index
    %c0_73 = arith.constant 0 : index
    %264 = vector.load %arg8[%c0_72, %c0_73] : memref<50x10xf32, #tpu.memory_space<vmem>>, vector<50x10xf32>
    %cst_74 = arith.constant dense<0.000000e+00> : vector<8x10xf32>
    %265 = tpu.matmul %263, %264, %cst_74 {dimension_numbers = #tpu.dot_dimension_numbers<[1], [0], [0], [1], [0, 0, 1, 1], [], []>} : vector<8x50xf32>, vector<50x10xf32>, vector<8x10xf32> -> vector<8x10xf32>
    %c0_75 = arith.constant 0 : index
    %c0_76 = arith.constant 0 : index
    %266 = vector.load %arg9[%c0_75, %c0_76] : memref<1x10xf32, #tpu.memory_space<vmem>>, vector<1x10xf32>
    %267 = vector.broadcast %266 : vector<1x10xf32> to vector<8x10xf32>
    %268 = arith.addf %265, %267 : vector<8x10xf32>
    %cst_77 = arith.constant dense<0xFF800000> : vector<8xf32>
    %269 = vector.multi_reduction <maximumf>, %268, %cst_77 [1] : vector<8x10xf32> to vector<8xf32>
    %270 = vector.shape_cast %269 : vector<8xf32> to vector<8x1xf32>
    %271 = vector.broadcast %270 : vector<8x1xf32> to vector<8x10xf32>
    %272 = arith.subf %268, %271 : vector<8x10xf32>
    %273 = math.exp %272 : vector<8x10xf32>
    %cst_78 = arith.constant dense<0.000000e+00> : vector<8xf32>
    %274 = vector.multi_reduction <add>, %273, %cst_78 [1] : vector<8x10xf32> to vector<8xf32>
    %275 = vector.shape_cast %274 : vector<8xf32> to vector<8x1xf32>
    %276 = math.log %275 : vector<8x1xf32>
    %277 = vector.broadcast %276 : vector<8x1xf32> to vector<8x10xf32>
    %278 = arith.subf %272, %277 : vector<8x10xf32>
    %c0_79 = arith.constant 0 : index
    %c0_80 = arith.constant 0 : index
    %279 = vector.load %arg10[%c0_79, %c0_80] : memref<8x10xf32, #tpu.memory_space<vmem>>, vector<8x10xf32>
    tpu.vector_store %arg10[%c0_79, %c0_80], %278 {strides = array<i32>} : memref<8x10xf32, #tpu.memory_space<vmem>>, vector<8x10xf32>,
    return
  }
  func.func @transform_0(%arg0: i32) -> (i32, i32, i32) {
    %c0_i32 = arith.constant 0 : i32
    %c0_i32_0 = arith.constant 0 : i32
    %c0_i32_1 = arith.constant 0 : i32
    return %c0_i32, %arg0, %c0_i32_0 : i32, i32, i32
  }
  func.func @transform_1(%arg0: i32) -> (i32, i32) {
    %c0_i32 = arith.constant 0 : i32
    %c0_i32_0 = arith.constant 0 : i32
    %c0_i32_1 = arith.constant 0 : i32
    return %c0_i32, %c0_i32_0 : i32, i32
  }
  func.func @transform_2(%arg0: i32) -> (i32, i32) {
    %c0_i32 = arith.constant 0 : i32
    %c0_i32_0 = arith.constant 0 : i32
    %c0_i32_1 = arith.constant 0 : i32
    return %c0_i32, %c0_i32_0 : i32, i32
  }
  func.func @transform_3(%arg0: i32) -> (i32, i32) {
    %c0_i32 = arith.constant 0 : i32
    %c0_i32_0 = arith.constant 0 : i32
    %c0_i32_1 = arith.constant 0 : i32
    return %c0_i32, %c0_i32_0 : i32, i32
  }
  func.func @transform_4(%arg0: i32) -> (i32, i32) {
    %c0_i32 = arith.constant 0 : i32
    %c0_i32_0 = arith.constant 0 : i32
    %c0_i32_1 = arith.constant 0 : i32
    return %c0_i32, %c0_i32_0 : i32, i32
  }
  func.func @transform_5(%arg0: i32) -> (i32, i32, i32) {
    %c0_i32 = arith.constant 0 : i32
    %c0_i32_0 = arith.constant 0 : i32
    %c0_i32_1 = arith.constant 0 : i32
    %c0_i32_2 = arith.constant 0 : i32
    return %c0_i32, %c0_i32_0, %c0_i32_1 : i32, i32, i32
  }
  func.func @transform_6(%arg0: i32) -> (i32, i32) {
    %c0_i32 = arith.constant 0 : i32
    %c0_i32_0 = arith.constant 0 : i32
    %c0_i32_1 = arith.constant 0 : i32
    return %c0_i32, %c0_i32_0 : i32, i32
  }
  func.func @transform_7(%arg0: i32) -> (i32, i32) {
    %c0_i32 = arith.constant 0 : i32
    %c0_i32_0 = arith.constant 0 : i32
    %c0_i32_1 = arith.constant 0 : i32
    return %c0_i32, %c0_i32_0 : i32, i32
  }
  func.func @transform_8(%arg0: i32) -> (i32, i32) {
    %c0_i32 = arith.constant 0 : i32
    %c0_i32_0 = arith.constant 0 : i32
    %c0_i32_1 = arith.constant 0 : i32
    return %c0_i32, %c0_i32_0 : i32, i32
  }
  func.func @transform_9(%arg0: i32) -> (i32, i32) {
    %c0_i32 = arith.constant 0 : i32
    %c0_i32_0 = arith.constant 0 : i32
    return %arg0, %c0_i32 : i32, i32
  }
}

</mosaic_0001>

<llo_original>
// kernel: cnnmnist_forward.1
$region0: #{cnnmnist_forward.1}
  #allocation0 [shape = 'u32[]', space=smem, size = 0x4, offset = 0x4, fixed_abs, tag = 'smem constant byte address 0x4 - core index']
  #allocation1 [shape = 'u32[72,128]{1,0:T(1,128)}', space=vmem, size = 0x9000, scoped, tag = 'internal scratch']
  %s0 = inlined_call_operand.vmem [shape: f32[28,8,28], index: 0, kind: input, shape index: {}]
  %s1 = inlined_call_operand.vmem [shape: f32[140,240], index: 1, kind: input, shape index: {}]
  %s2 = inlined_call_operand.vmem [shape: f32[1,120], index: 2, kind: input, shape index: {}]
  %s3 = inlined_call_operand.vmem [shape: f32[600,160], index: 3, kind: input, shape index: {}]
  %s4 = inlined_call_operand.vmem [shape: f32[1,80], index: 4, kind: input, shape index: {}]
  %s5 = inlined_call_operand.vmem [shape: f32[4,80,50], index: 5, kind: input, shape index: {}]
  %s6 = inlined_call_operand.vmem [shape: f32[1,50], index: 6, kind: input, shape index: {}]
  %s7 = inlined_call_operand.vmem [shape: f32[50,10], index: 7, kind: input, shape index: {}]
  %s8 = inlined_call_operand.vmem [shape: f32[1,10], index: 8, kind: input, shape index: {}]
  %s9 = inlined_call_operand.vmem [shape: f32[8,10], index: 9, kind: output, shape index: {}]
  %s10 = sld [smem:[#allocation0]]
  $region46: #{cnnmnist_forward.1} parent=0
    _
  %s12 = ssub.s32 1, %s10
  %s13 = scalar_select 0, %s12, %s10
  // Predicated region
  $region2: #{cnnmnist_forward.1} parent=0 // pred_check
    _
  $region3: #{cnnmnist_forward.1} parent=0 // pred_check_branch
    %15 = sbr.rel (0) target = $region5
  $region4: #{cnnmnist_forward.1} parent=0 // pred_region
    _
  $region5: #{cnnmnist_forward.1} parent=0 // pred_fallthru
    _
  // Predicated region
  $region6: #{cnnmnist_forward.1} parent=0 // pred_check
    _
  $region7: #{cnnmnist_forward.1} parent=0 // pred_check_branch
    %17 = sbr.rel (0) target = $region9
  $region8: #{cnnmnist_forward.1} parent=0 // pred_region
    _
  $region9: #{cnnmnist_forward.1} parent=0 // pred_fallthru
    _
  // Predicated region
  $region10: #{cnnmnist_forward.1} parent=0 // pred_check
    _
  $region11: #{cnnmnist_forward.1} parent=0 // pred_check_branch
    %19 = sbr.rel (0) target = $region13
  $region12: #{cnnmnist_forward.1} parent=0 // pred_region
    _
  $region13: #{cnnmnist_forward.1} parent=0 // pred_fallthru
    _
  // Predicated region
  $region14: #{cnnmnist_forward.1} parent=0 // pred_check
    _
  $region15: #{cnnmnist_forward.1} parent=0 // pred_check_branch
    %21 = sbr.rel (0) target = $region17
  $region16: #{cnnmnist_forward.1} parent=0 // pred_region
    _
  $region17: #{cnnmnist_forward.1} parent=0 // pred_fallthru
    _
  // Predicated region
  $region18: #{cnnmnist_forward.1} parent=0 // pred_check
    _
  $region19: #{cnnmnist_forward.1} parent=0 // pred_check_branch
    %23 = sbr.rel (0) target = $region21
  $region20: #{cnnmnist_forward.1} parent=0 // pred_region
    _
  $region21: #{cnnmnist_forward.1} parent=0 // pred_fallthru
    _
  // Predicated region
  $region22: #{cnnmnist_forward.1} parent=0 // pred_check
    _
  $region23: #{cnnmnist_forward.1} parent=0 // pred_check_branch
    %25 = sbr.rel (0) target = $region25
  $region24: #{cnnmnist_forward.1} parent=0 // pred_region
    _
  $region25: #{cnnmnist_forward.1} parent=0 // pred_fallthru
    _
  // Predicated region
  $region26: #{cnnmnist_forward.1} parent=0 // pred_check
    _
  $region27: #{cnnmnist_forward.1} parent=0 // pred_check_branch
    %27 = sbr.rel (0) target = $region29
  $region28: #{cnnmnist_forward.1} parent=0 // pred_region
    _
  $region29: #{cnnmnist_forward.1} parent=0 // pred_fallthru
    _
  // Predicated region
  $region30: #{cnnmnist_forward.1} parent=0 // pred_check
    _
  $region31: #{cnnmnist_forward.1} parent=0 // pred_check_branch
    %29 = sbr.rel (0) target = $region33
  $region32: #{cnnmnist_forward.1} parent=0 // pred_region
    _
  $region33: #{cnnmnist_forward.1} parent=0 // pred_fallthru
    _
  // Predicated region
  $region34: #{cnnmnist_forward.1} parent=0 // pred_check
    _
  $region35: #{cnnmnist_forward.1} parent=0 // pred_check_branch
    %31 = sbr.rel (0) target = $region37
  $region36: #{cnnmnist_forward.1} parent=0 // pred_region
    _
  $region37: #{cnnmnist_forward.1} parent=0 // pred_fallthru
    _
  %v32 = vld [vmem:[%s0] sm:$0xff]
  %v33 = vld [vmem:[%s0 + $0x8] sm:$0xff]
  %v34 = vld [vmem:[%s0 + $0x10] sm:$0xff]
  %v35 = vld [vmem:[%s0 + $0x18] sm:$0xff]
  %v36 = vld [vmem:[%s0 + $0x20] sm:$0xff]
  %v37 = vld [vmem:[%s0 + $0x28] sm:$0xff]
  %v38 = vld [vmem:[%s0 + $0x30] sm:$0xff]
  %v39 = vld [vmem:[%s0 + $0x38] sm:$0xff]
  %v40 = vld [vmem:[%s0 + $0x40] sm:$0xff]
  %v41 = vld [vmem:[%s0 + $0x48] sm:$0xff]
  %v42 = vld [vmem:[%s0 + $0x50] sm:$0xff]
  %v43 = vld [vmem:[%s0 + $0x58] sm:$0xff]
  %v44 = vld [vmem:[%s0 + $0x60] sm:$0xff]
  %v45 = vld [vmem:[%s0 + $0x68] sm:$0xff]
  %v46 = vld [vmem:[%s0 + $0x70] sm:$0xff]
  %v47 = vld [vmem:[%s0 + $0x78] sm:$0xff]
  %v48 = vld [vmem:[%s0 + $0x80] sm:$0xff]
  %v49 = vld [vmem:[%s0 + $0x88] sm:$0xff]
  %v50 = vld [vmem:[%s0 + $0x90] sm:$0xff]
  %v51 = vld [vmem:[%s0 + $0x98] sm:$0xff]
  %v52 = vld [vmem:[%s0 + $0xa0] sm:$0xff]
  %v53 = vld [vmem:[%s0 + $0xa8] sm:$0xff]
  %v54 = vld [vmem:[%s0 + $0xb0] sm:$0xff]
  %v55 = vld [vmem:[%s0 + $0xb8] sm:$0xff]
  %v56 = vld [vmem:[%s0 + $0xc0] sm:$0xff]
  %v57 = vld [vmem:[%s0 + $0xc8] sm:$0xff]
  %v58 = vld [vmem:[%s0 + $0xd0] sm:$0xff]
  %v59 = vld [vmem:[%s0 + $0xd8] sm:$0xff]
  %84 = vrot.lane.b32.xlu0 %v33, 28
  %v85 = vpop.permute.xlu0 %84
  %86 = vrot.lane.b32.xlu0 %v34, 28
  %v87 = vpop.permute.xlu0 %86
  %88 = vrot.lane.b32.xlu0 %v35, 28
  %v89 = vpop.permute.xlu0 %88
  %90 = vrot.lane.b32.xlu0 %v36, 28
  %v91 = vpop.permute.xlu0 %90
  %92 = vrot.lane.b32.xlu0 %v37, 28
  %v93 = vpop.permute.xlu0 %92
  %94 = vrot.lane.b32.xlu0 %v38, 28
  %v95 = vpop.permute.xlu0 %94
  %96 = vrot.lane.b32.xlu0 %v39, 28
  %v97 = vpop.permute.xlu0 %96
  %98 = vrot.lane.b32.xlu0 %v40, 28
  %v99 = vpop.permute.xlu0 %98
  %100 = vrot.lane.b32.xlu0 %v41, 28
  %v101 = vpop.permute.xlu0 %100
  %102 = vrot.lane.b32.xlu0 %v42, 28
  %v103 = vpop.permute.xlu0 %102
  %104 = vrot.lane.b32.xlu0 %v43, 28
  %v105 = vpop.permute.xlu0 %104
  %106 = vrot.lane.b32.xlu0 %v44, 28
  %v107 = vpop.permute.xlu0 %106
  %108 = vrot.lane.b32.xlu0 %v45, 28
  %v109 = vpop.permute.xlu0 %108
  %110 = vrot.lane.b32.xlu0 %v46, 28
  %v111 = vpop.permute.xlu0 %110
  %112 = vrot.lane.b32.xlu0 %v47, 28
  %v113 = vpop.permute.xlu0 %112
  %114 = vrot.lane.b32.xlu0 %v48, 28
  %v115 = vpop.permute.xlu0 %114
  %116 = vrot.lane.b32.xlu0 %v49, 28
  %v117 = vpop.permute.xlu0 %116
  %118 = vrot.lane.b32.xlu0 %v50, 28
  %v119 = vpop.permute.xlu0 %118
  %120 = vrot.lane.b32.xlu0 %v51, 28
  %v121 = vpop.permute.xlu0 %120
  %122 = vrot.lane.b32.xlu0 %v52, 28
  %v123 = vpop.permute.xlu0 %122
  %124 = vrot.lane.b32.xlu0 %v53, 28
  %v125 = vpop.permute.xlu0 %124
  %126 = vrot.lane.b32.xlu0 %v54, 28
  %v127 = vpop.permute.xlu0 %126
  %128 = vrot.lane.b32.xlu0 %v55, 28
  %v129 = vpop.permute.xlu0 %128
  %130 = vrot.lane.b32.xlu0 %v56, 28
  %v131 = vpop.permute.xlu0 %130
  %157 = vrot.lane.b32.xlu0 %v34, 56
  %v158 = vpop.permute.xlu0 %157
  %159 = vrot.lane.b32.xlu0 %v35, 56
  %v160 = vpop.permute.xlu0 %159
  %161 = vrot.lane.b32.xlu0 %v36, 56
  %v162 = vpop.permute.xlu0 %161
  %163 = vrot.lane.b32.xlu0 %v37, 56
  %v164 = vpop.permute.xlu0 %163
  %165 = vrot.lane.b32.xlu0 %v38, 56
  %v166 = vpop.permute.xlu0 %165
  %167 = vrot.lane.b32.xlu0 %v39, 56
  %v168 = vpop.permute.xlu0 %167
  %169 = vrot.lane.b32.xlu0 %v40, 56
  %v170 = vpop.permute.xlu0 %169
  %171 = vrot.lane.b32.xlu0 %v41, 56
  %v172 = vpop.permute.xlu0 %171
  %173 = vrot.lane.b32.xlu0 %v42, 56
  %v174 = vpop.permute.xlu0 %173
  %175 = vrot.lane.b32.xlu0 %v43, 56
  %v176 = vpop.permute.xlu0 %175
  %177 = vrot.lane.b32.xlu0 %v44, 56
  %v178 = vpop.permute.xlu0 %177
  %179 = vrot.lane.b32.xlu0 %v45, 56
  %v180 = vpop.permute.xlu0 %179
  %181 = vrot.lane.b32.xlu0 %v46, 56
  %v182 = vpop.permute.xlu0 %181
  %183 = vrot.lane.b32.xlu0 %v47, 56
  %v184 = vpop.permute.xlu0 %183
  %185 = vrot.lane.b32.xlu0 %v48, 56
  %v186 = vpop.permute.xlu0 %185
  %187 = vrot.lane.b32.xlu0 %v49, 56
  %v188 = vpop.permute.xlu0 %187
  %189 = vrot.lane.b32.xlu0 %v50, 56
  %v190 = vpop.permute.xlu0 %189
  %191 = vrot.lane.b32.xlu0 %v51, 56
  %v192 = vpop.permute.xlu0 %191
  %193 = vrot.lane.b32.xlu0 %v52, 56
  %v194 = vpop.permute.xlu0 %193
  %195 = vrot.lane.b32.xlu0 %v53, 56
  %v196 = vpop.permute.xlu0 %195
  %197 = vrot.lane.b32.xlu0 %v54, 56
  %v198 = vpop.permute.xlu0 %197
  %199 = vrot.lane.b32.xlu0 %v55, 56
  %v200 = vpop.permute.xlu0 %199
  %201 = vrot.lane.b32.xlu0 %v56, 56
  %v202 = vpop.permute.xlu0 %201
  %203 = vrot.lane.b32.xlu0 %v57, 56
  %v204 = vpop.permute.xlu0 %203
  %230 = vrot.lane.b32.xlu0 %v35, 84
  %v231 = vpop.permute.xlu0 %230
  %232 = vrot.lane.b32.xlu0 %v36, 84
  %v233 = vpop.permute.xlu0 %232
  %234 = vrot.lane.b32.xlu0 %v37, 84
  %v235 = vpop.permute.xlu0 %234
  %236 = vrot.lane.b32.xlu0 %v38, 84
  %v237 = vpop.permute.xlu0 %236
  %238 = vrot.lane.b32.xlu0 %v39, 84
  %v239 = vpop.permute.xlu0 %238
  %240 = vrot.lane.b32.xlu0 %v40, 84
  %v241 = vpop.permute.xlu0 %240
  %242 = vrot.lane.b32.xlu0 %v41, 84
  %v243 = vpop.permute.xlu0 %242
  %244 = vrot.lane.b32.xlu0 %v42, 84
  %v245 = vpop.permute.xlu0 %244
  %246 = vrot.lane.b32.xlu0 %v43, 84
  %v247 = vpop.permute.xlu0 %246
  %248 = vrot.lane.b32.xlu0 %v44, 84
  %v249 = vpop.permute.xlu0 %248
  %250 = vrot.lane.b32.xlu0 %v45, 84
  %v251 = vpop.permute.xlu0 %250
  %252 = vrot.lane.b32.xlu0 %v46, 84
  %v253 = vpop.permute.xlu0 %252
  %254 = vrot.lane.b32.xlu0 %v47, 84
  %v255 = vpop.permute.xlu0 %254
  %256 = vrot.lane.b32.xlu0 %v48, 84
  %v257 = vpop.permute.xlu0 %256
  %258 = vrot.lane.b32.xlu0 %v49, 84
  %v259 = vpop.permute.xlu0 %258
  %260 = vrot.lane.b32.xlu0 %v50, 84
  %v261 = vpop.permute.xlu0 %260
  %262 = vrot.lane.b32.xlu0 %v51, 84
  %v263 = vpop.permute.xlu0 %262
  %264 = vrot.lane.b32.xlu0 %v52, 84
  %v265 = vpop.permute.xlu0 %264
  %266 = vrot.lane.b32.xlu0 %v53, 84
  %v267 = vpop.permute.xlu0 %266
  %268 = vrot.lane.b32.xlu0 %v54, 84
  %v269 = vpop.permute.xlu0 %268
  %270 = vrot.lane.b32.xlu0 %v55, 84
  %v271 = vpop.permute.xlu0 %270
  %272 = vrot.lane.b32.xlu0 %v56, 84
  %v273 = vpop.permute.xlu0 %272
  %274 = vrot.lane.b32.xlu0 %v57, 84
  %v275 = vpop.permute.xlu0 %274
  %276 = vrot.lane.b32.xlu0 %v58, 84
  %v277 = vpop.permute.xlu0 %276
  %303 = vrot.lane.b32.xlu0 %v36, 112
  %v304 = vpop.permute.xlu0 %303
  %305 = vrot.lane.b32.xlu0 %v37, 112
  %v306 = vpop.permute.xlu0 %305
  %307 = vrot.lane.b32.xlu0 %v38, 112
  %v308 = vpop.permute.xlu0 %307
  %309 = vrot.lane.b32.xlu0 %v39, 112
  %v310 = vpop.permute.xlu0 %309
  %311 = vrot.lane.b32.xlu0 %v40, 112
  %v312 = vpop.permute.xlu0 %311
  %313 = vrot.lane.b32.xlu0 %v41, 112
  %v314 = vpop.permute.xlu0 %313
  %315 = vrot.lane.b32.xlu0 %v42, 112
  %v316 = vpop.permute.xlu0 %315
  %317 = vrot.lane.b32.xlu0 %v43, 112
  %v318 = vpop.permute.xlu0 %317
  %319 = vrot.lane.b32.xlu0 %v44, 112
  %v320 = vpop.permute.xlu0 %319
  %321 = vrot.lane.b32.xlu0 %v45, 112
  %v322 = vpop.permute.xlu0 %321
  %323 = vrot.lane.b32.xlu0 %v46, 112
  %v324 = vpop.permute.xlu0 %323
  %325 = vrot.lane.b32.xlu0 %v47, 112
  %v326 = vpop.permute.xlu0 %325
  %327 = vrot.lane.b32.xlu0 %v48, 112
  %v328 = vpop.permute.xlu0 %327
  %329 = vrot.lane.b32.xlu0 %v49, 112
  %v330 = vpop.permute.xlu0 %329
  %331 = vrot.lane.b32.xlu0 %v50, 112
  %v332 = vpop.permute.xlu0 %331
  %333 = vrot.lane.b32.xlu0 %v51, 112
  %v334 = vpop.permute.xlu0 %333
  %335 = vrot.lane.b32.xlu0 %v52, 112
  %v336 = vpop.permute.xlu0 %335
  %337 = vrot.lane.b32.xlu0 %v53, 112
  %v338 = vpop.permute.xlu0 %337
  %339 = vrot.lane.b32.xlu0 %v54, 112
  %v340 = vpop.permute.xlu0 %339
  %341 = vrot.lane.b32.xlu0 %v55, 112
  %v342 = vpop.permute.xlu0 %341
  %343 = vrot.lane.b32.xlu0 %v56, 112
  %v344 = vpop.permute.xlu0 %343
  %345 = vrot.lane.b32.xlu0 %v57, 112
  %v346 = vpop.permute.xlu0 %345
  %347 = vrot.lane.b32.xlu0 %v58, 112
  %v348 = vpop.permute.xlu0 %347
  %349 = vrot.lane.b32.xlu0 %v59, 112
  %v350 = vpop.permute.xlu0 %349
  %vm375 = vcmask 228352
  %v376 = vsel %vm375, %v32, %v85
  %v377 = vsel %vm375, %v33, %v87
  %v378 = vsel %vm375, %v34, %v89
  %v379 = vsel %vm375, %v35, %v91
  %v380 = vsel %vm375, %v36, %v93
  %v381 = vsel %vm375, %v37, %v95
  %v382 = vsel %vm375, %v38, %v97
  %v383 = vsel %vm375, %v39, %v99
  %v384 = vsel %vm375, %v40, %v101
  %v385 = vsel %vm375, %v41, %v103
  %v386 = vsel %vm375, %v42, %v105
  %v387 = vsel %vm375, %v43, %v107
  %v388 = vsel %vm375, %v44, %v109
  %v389 = vsel %vm375, %v45, %v111
  %v390 = vsel %vm375, %v46, %v113
  %v391 = vsel %vm375, %v47, %v115
  %v392 = vsel %vm375, %v48, %v117
  %v393 = vsel %vm375, %v49, %v119
  %v394 = vsel %vm375, %v50, %v121
  %v395 = vsel %vm375, %v51, %v123
  %v396 = vsel %vm375, %v52, %v125
  %v397 = vsel %vm375, %v53, %v127
  %v398 = vsel %vm375, %v54, %v129
  %v399 = vsel %vm375, %v55, %v131
  %vm400 = vcmask 457728
  %v401 = vsel %vm400, %v376, %v158
  %v402 = vsel %vm400, %v377, %v160
  %v403 = vsel %vm400, %v378, %v162
  %v404 = vsel %vm400, %v379, %v164
  %v405 = vsel %vm400, %v380, %v166
  %v406 = vsel %vm400, %v381, %v168
  %v407 = vsel %vm400, %v382, %v170
  %v408 = vsel %vm400, %v383, %v172
  %v409 = vsel %vm400, %v384, %v174
  %v410 = vsel %vm400, %v385, %v176
  %v411 = vsel %vm400, %v386, %v178
  %v412 = vsel %vm400, %v387, %v180
  %v413 = vsel %vm400, %v388, %v182
  %v414 = vsel %vm400, %v389, %v184
  %v415 = vsel %vm400, %v390, %v186
  %v416 = vsel %vm400, %v391, %v188
  %v417 = vsel %vm400, %v392, %v190
  %v418 = vsel %vm400, %v393, %v192
  %v419 = vsel %vm400, %v394, %v194
  %v420 = vsel %vm400, %v395, %v196
  %v421 = vsel %vm400, %v396, %v198
  %v422 = vsel %vm400, %v397, %v200
  %v423 = vsel %vm400, %v398, %v202
  %v424 = vsel %vm400, %v399, %v204
  %vm425 = vcmask 687104
  %v426 = vsel %vm425, %v401, %v231
  %v427 = vsel %vm425, %v402, %v233
  %v428 = vsel %vm425, %v403, %v235
  %v429 = vsel %vm425, %v404, %v237
  %v430 = vsel %vm425, %v405, %v239
  %v431 = vsel %vm425, %v406, %v241
  %v432 = vsel %vm425, %v407, %v243
  %v433 = vsel %vm425, %v408, %v245
  %v434 = vsel %vm425, %v409, %v247
  %v435 = vsel %vm425, %v410, %v249
  %v436 = vsel %vm425, %v411, %v251
  %v437 = vsel %vm425, %v412, %v253
  %v438 = vsel %vm425, %v413, %v255
  %v439 = vsel %vm425, %v414, %v257
  %v440 = vsel %vm425, %v415, %v259
  %v441 = vsel %vm425, %v416, %v261
  %v442 = vsel %vm425, %v417, %v263
  %v443 = vsel %vm425, %v418, %v265
  %v444 = vsel %vm425, %v419, %v267
  %v445 = vsel %vm425, %v420, %v269
  %v446 = vsel %vm425, %v421, %v271
  %v447 = vsel %vm425, %v422, %v273
  %v448 = vsel %vm425, %v423, %v275
  %v449 = vsel %vm425, %v424, %v277
  %vm450 = vcmask 916480
  %v451 = vsel %vm450, %v426, %v304
  %v452 = vsel %vm450, %v427, %v306
  %v453 = vsel %vm450, %v428, %v308
  %v454 = vsel %vm450, %v429, %v310
  %v455 = vsel %vm450, %v430, %v312
  %v456 = vsel %vm450, %v431, %v314
  %v457 = vsel %vm450, %v432, %v316
  %v458 = vsel %vm450, %v433, %v318
  %v459 = vsel %vm450, %v434, %v320
  %v460 = vsel %vm450, %v435, %v322
  %v461 = vsel %vm450, %v436, %v324
  %v462 = vsel %vm450, %v437, %v326
  %v463 = vsel %vm450, %v438, %v328
  %v464 = vsel %vm450, %v439, %v330
  %v465 = vsel %vm450, %v440, %v332
  %v466 = vsel %vm450, %v441, %v334
  %v467 = vsel %vm450, %v442, %v336
  %v468 = vsel %vm450, %v443, %v338
  %v469 = vsel %vm450, %v444, %v340
  %v470 = vsel %vm450, %v445, %v342
  %v471 = vsel %vm450, %v446, %v344
  %v472 = vsel %vm450, %v447, %v346
  %v473 = vsel %vm450, %v448, %v348
  %v474 = vsel %vm450, %v449, %v350
  %v475 = vld [vmem:[%s1] sm:$0xff]
  %v476 = vld [vmem:[%s1 + $0x8] sm:$0xff]
  %v477 = vld [vmem:[%s1 + $0x10] sm:$0xff]
  %v478 = vld [vmem:[%s1 + $0x18] sm:$0xff]
  %v479 = vld [vmem:[%s1 + $0x20] sm:$0xff]
  %v480 = vld [vmem:[%s1 + $0x28] sm:$0xff]
  %v481 = vld [vmem:[%s1 + $0x30] sm:$0xff]
  %v482 = vld [vmem:[%s1 + $0x38] sm:$0xff]
  %v483 = vld [vmem:[%s1 + $0x40] sm:$0xff]
  %v484 = vld [vmem:[%s1 + $0x48] sm:$0xff]
  %v485 = vld [vmem:[%s1 + $0x50] sm:$0xff]
  %v486 = vld [vmem:[%s1 + $0x58] sm:$0xff]
  %v487 = vld [vmem:[%s1 + $0x60] sm:$0xff]
  %v488 = vld [vmem:[%s1 + $0x68] sm:$0xff]
  %v489 = vld [vmem:[%s1 + $0x70] sm:$0xff]
  %v490 = vld [vmem:[%s1 + $0x78] sm:$0xff]
  %v491 = vld [vmem:[%s1 + $0x80] sm:$0xff]
  %v492 = vld [vmem:[%s1 + $0x88] sm:$0xff]
  %v493 = vld [vmem:[%s1 + $0x90] sm:$0xff]
  %v494 = vld [vmem:[%s1 + $0x98] sm:$0xff]
  %v495 = vld [vmem:[%s1 + $0xa0] sm:$0xff]
  %v496 = vld [vmem:[%s1 + $0xa8] sm:$0xff]
  %v497 = vld [vmem:[%s1 + $0xb0] sm:$0xff]
  %v498 = vld [vmem:[%s1 + $0xb8] sm:$0xff]
  %v499 = vld [vmem:[%s1 + $0xc0] sm:$0xff]
  %v500 = vld [vmem:[%s1 + $0xc8] sm:$0xff]
  %v501 = vld [vmem:[%s1 + $0xd0] sm:$0xff]
  %v502 = vld [vmem:[%s1 + $0xd8] sm:$0xff]
  %v503 = vld [vmem:[%s1 + $0xe0] sm:$0xff]
  %v504 = vld [vmem:[%s1 + $0xe8] sm:$0xff]
  %v505 = vld [vmem:[%s1 + $0xf0] sm:$0xff]
  %v506 = vld [vmem:[%s1 + $0xf8] sm:$0xff]
  %v507 = vld [vmem:[%s1 + $0x100] sm:$0xff]
  %v508 = vld [vmem:[%s1 + $0x108] sm:$0xff]
  %v509 = vld [vmem:[%s1 + $0x110] sm:$0xf]
  %v510 = vld [vmem:[%s1 + $0x118] sm:$0xf]
  %vm511 = vcmask 97280
  %v512 = vsel %vm511, %v304, 0
  %v514 = vsel %vm511, %v306, 0
  %v516 = vsel %vm511, %v308, 0
  %v518 = vsel %vm511, %v310, 0
  %v520 = vsel %vm511, %v312, 0
  %v522 = vsel %vm511, %v314, 0
  %v524 = vsel %vm511, %v316, 0
  %v526 = vsel %vm511, %v318, 0
  %v528 = vsel %vm511, %v320, 0
  %v530 = vsel %vm511, %v322, 0
  %v532 = vsel %vm511, %v324, 0
  %v534 = vsel %vm511, %v326, 0
  %v536 = vsel %vm511, %v328, 0
  %v538 = vsel %vm511, %v330, 0
  %v540 = vsel %vm511, %v332, 0
  %v542 = vsel %vm511, %v334, 0
  %v544 = vsel %vm511, %v336, 0
  %v546 = vsel %vm511, %v338, 0
  %v548 = vsel %vm511, %v340, 0
  %v550 = vsel %vm511, %v342, 0
  %v552 = vsel %vm511, %v344, 0
  %v554 = vsel %vm511, %v346, 0
  %v556 = vsel %vm511, %v348, 0
  %v558 = vsel %vm511, %v350, 0
  %vm560 = vcmask 1043456
  %v562 = vsel %vm560, %v509, 0
  %v565 = vsel %vm560, %v510, 0
  %567 = vmatpush.msra.mxu0 %v505
  %568 = vmatpush.msra.mxu0 %v503
  %569 = vmatpush.msra.mxu0 %v501
  %570 = vmatpush.msra.mxu0 %v499
  %571 = vmatpush.msra.mxu0 %v497
  %572 = vmatpush.msra.mxu0 %v495
  %573 = vmatpush.msra.mxu0 %v493
  %574 = vmatpush.msra.mxu0 %v491
  %575 = vmatpush.msra.mxu0 %v489
  %576 = vmatpush.msra.mxu0 %v487
  %577 = vmatpush.msra.mxu0 %v485
  %578 = vmatpush.msra.mxu0 %v483
  %579 = vmatpush.msra.mxu0 %v481
  %580 = vmatpush.msra.mxu0 %v479
  %581 = vmatpush.msra.mxu0 %v477
  %582 = vmatpush.msra.mxu0 %v475
  %583 = vmatmul.f32.gmra.mxu0 %v451
  %v584 = vpop.f32.mrf.mxu0
  %v585 = vadd.f32 0.0, %v584
  %586 = vmatmul.f32.gmra.mxu0 %v452
  %v587 = vpop.f32.mrf.mxu0
  %v588 = vadd.f32 0.0, %v587
  %589 = vmatmul.f32.gmra.mxu0 %v453
  %v590 = vpop.f32.mrf.mxu0
  %v591 = vadd.f32 0.0, %v590
  %592 = vmatmul.f32.gmra.mxu0 %v454
  %v593 = vpop.f32.mrf.mxu0
  %v594 = vadd.f32 0.0, %v593
  %595 = vmatmul.f32.gmra.mxu0 %v455
  %v596 = vpop.f32.mrf.mxu0
  %v597 = vadd.f32 0.0, %v596
  %598 = vmatmul.f32.gmra.mxu0 %v456
  %v599 = vpop.f32.mrf.mxu0
  %v600 = vadd.f32 0.0, %v599
  %601 = vmatmul.f32.gmra.mxu0 %v457
  %v602 = vpop.f32.mrf.mxu0
  %v603 = vadd.f32 0.0, %v602
  %604 = vmatmul.f32.gmra.mxu0 %v458
  %v605 = vpop.f32.mrf.mxu0
  %v606 = vadd.f32 0.0, %v605
  %607 = vmatmul.f32.gmra.mxu0 %v459
  %v608 = vpop.f32.mrf.mxu0
  %v609 = vadd.f32 0.0, %v608
  %610 = vmatmul.f32.gmra.mxu0 %v460
  %v611 = vpop.f32.mrf.mxu0
  %v612 = vadd.f32 0.0, %v611
  %613 = vmatmul.f32.gmra.mxu0 %v461
  %v614 = vpop.f32.mrf.mxu0
  %v615 = vadd.f32 0.0, %v614
  %616 = vmatmul.f32.gmra.mxu0 %v462
  %v617 = vpop.f32.mrf.mxu0
  %v618 = vadd.f32 0.0, %v617
  %619 = vmatmul.f32.gmra.mxu0 %v463
  %v620 = vpop.f32.mrf.mxu0
  %v621 = vadd.f32 0.0, %v620
  %622 = vmatmul.f32.gmra.mxu0 %v464
  %v623 = vpop.f32.mrf.mxu0
  %v624 = vadd.f32 0.0, %v623
  %625 = vmatmul.f32.gmra.mxu0 %v465
  %v626 = vpop.f32.mrf.mxu0
  %v627 = vadd.f32 0.0, %v626
  %628 = vmatmul.f32.gmra.mxu0 %v466
  %v629 = vpop.f32.mrf.mxu0
  %v630 = vadd.f32 0.0, %v629
  %631 = vmatmul.f32.gmra.mxu0 %v467
  %v632 = vpop.f32.mrf.mxu0
  %v633 = vadd.f32 0.0, %v632
  %634 = vmatmul.f32.gmra.mxu0 %v468
  %v635 = vpop.f32.mrf.mxu0
  %v636 = vadd.f32 0.0, %v635
  %637 = vmatmul.f32.gmra.mxu0 %v469
  %v638 = vpop.f32.mrf.mxu0
  %v639 = vadd.f32 0.0, %v638
  %640 = vmatmul.f32.gmra.mxu0 %v470
  %v641 = vpop.f32.mrf.mxu0
  %v642 = vadd.f32 0.0, %v641
  %643 = vmatmul.f32.gmra.mxu0 %v471
  %v644 = vpop.f32.mrf.mxu0
  %v645 = vadd.f32 0.0, %v644
  %646 = vmatmul.f32.gmra.mxu0 %v472
  %v647 = vpop.f32.mrf.mxu0
  %v648 = vadd.f32 0.0, %v647
  %649 = vmatmul.f32.gmra.mxu0 %v473
  %v650 = vpop.f32.mrf.mxu0
  %v651 = vadd.f32 0.0, %v650
  %652 = vmatmul.f32.gmra.mxu0 %v474
  %v653 = vpop.f32.mrf.mxu0
  %v654 = vadd.f32 0.0, %v653
  %655 = vdwg.mxu0
  %656 = vmatpush.msra.mxu0 0.0
  %657 = vmatpush.msra.mxu0 0.0
  %658 = vmatpush.msra.mxu0 0.0
  %659 = vmatpush.msra.mxu0 0.0
  %660 = vmatpush.msra.mxu0 0.0
  %661 = vmatpush.msra.mxu0 0.0
  %662 = vmatpush.msra.mxu0 0.0
  %663 = vmatpush.msra.mxu0 0.0
  %664 = vmatpush.msra.mxu0 0.0
  %665 = vmatpush.msra.mxu0 0.0
  %666 = vmatpush.msra.mxu0 0.0
  %667 = vmatpush.msra.mxu0 0.0
  %668 = vmatpush.msra.mxu0 0.0
  %669 = vmatpush.msra.mxu0 0.0
  %670 = vmatpush.msra.mxu0 %v562
  %671 = vmatpush.msra.mxu0 %v507
  %672 = vmatmul.f32.gmra.mxu0 %v512
  %v673 = vpop.f32.mrf.mxu0
  %v674 = vadd.f32 %v585, %v673
  %675 = vmatmul.f32.gmra.mxu0 %v514
  %v676 = vpop.f32.mrf.mxu0
  %v677 = vadd.f32 %v588, %v676
  %678 = vmatmul.f32.gmra.mxu0 %v516
  %v679 = vpop.f32.mrf.mxu0
  %v680 = vadd.f32 %v591, %v679
  %681 = vmatmul.f32.gmra.mxu0 %v518
  %v682 = vpop.f32.mrf.mxu0
  %v683 = vadd.f32 %v594, %v682
  %684 = vmatmul.f32.gmra.mxu0 %v520
  %v685 = vpop.f32.mrf.mxu0
  %v686 = vadd.f32 %v597, %v685
  %687 = vmatmul.f32.gmra.mxu0 %v522
  %v688 = vpop.f32.mrf.mxu0
  %v689 = vadd.f32 %v600, %v688
  %690 = vmatmul.f32.gmra.mxu0 %v524
  %v691 = vpop.f32.mrf.mxu0
  %v692 = vadd.f32 %v603, %v691
  %693 = vmatmul.f32.gmra.mxu0 %v526
  %v694 = vpop.f32.mrf.mxu0
  %v695 = vadd.f32 %v606, %v694
  %696 = vmatmul.f32.gmra.mxu0 %v528
  %v697 = vpop.f32.mrf.mxu0
  %v698 = vadd.f32 %v609, %v697
  %699 = vmatmul.f32.gmra.mxu0 %v530
  %v700 = vpop.f32.mrf.mxu0
  %v701 = vadd.f32 %v612, %v700
  %702 = vmatmul.f32.gmra.mxu0 %v532
  %v703 = vpop.f32.mrf.mxu0
  %v704 = vadd.f32 %v615, %v703
  %705 = vmatmul.f32.gmra.mxu0 %v534
  %v706 = vpop.f32.mrf.mxu0
  %v707 = vadd.f32 %v618, %v706
  %708 = vmatmul.f32.gmra.mxu0 %v536
  %v709 = vpop.f32.mrf.mxu0
  %v710 = vadd.f32 %v621, %v709
  %711 = vmatmul.f32.gmra.mxu0 %v538
  %v712 = vpop.f32.mrf.mxu0
  %v713 = vadd.f32 %v624, %v712
  %714 = vmatmul.f32.gmra.mxu0 %v540
  %v715 = vpop.f32.mrf.mxu0
  %v716 = vadd.f32 %v627, %v715
  %717 = vmatmul.f32.gmra.mxu0 %v542
  %v718 = vpop.f32.mrf.mxu0
  %v719 = vadd.f32 %v630, %v718
  %720 = vmatmul.f32.gmra.mxu0 %v544
  %v721 = vpop.f32.mrf.mxu0
  %v722 = vadd.f32 %v633, %v721
  %723 = vmatmul.f32.gmra.mxu0 %v546
  %v724 = vpop.f32.mrf.mxu0
  %v725 = vadd.f32 %v636, %v724
  %726 = vmatmul.f32.gmra.mxu0 %v548
  %v727 = vpop.f32.mrf.mxu0
  %v728 = vadd.f32 %v639, %v727
  %729 = vmatmul.f32.gmra.mxu0 %v550
  %v730 = vpop.f32.mrf.mxu0
  %v731 = vadd.f32 %v642, %v730
  %732 = vmatmul.f32.gmra.mxu0 %v552
  %v733 = vpop.f32.mrf.mxu0
  %v734 = vadd.f32 %v645, %v733
  %735 = vmatmul.f32.gmra.mxu0 %v554
  %v736 = vpop.f32.mrf.mxu0
  %v737 = vadd.f32 %v648, %v736
  %738 = vmatmul.f32.gmra.mxu0 %v556
  %v739 = vpop.f32.mrf.mxu0
  %v740 = vadd.f32 %v651, %v739
  %741 = vmatmul.f32.gmra.mxu0 %v558
  %v742 = vpop.f32.mrf.mxu0
  %v743 = vadd.f32 %v654, %v742
  %744 = vdwg.mxu0
  %745 = vmatpush.msra.mxu0 %v506
  %746 = vmatpush.msra.mxu0 %v504
  %747 = vmatpush.msra.mxu0 %v502
  %748 = vmatpush.msra.mxu0 %v500
  %749 = vmatpush.msra.mxu0 %v498
  %750 = vmatpush.msra.mxu0 %v496
  %751 = vmatpush.msra.mxu0 %v494
  %752 = vmatpush.msra.mxu0 %v492
  %753 = vmatpush.msra.mxu0 %v490
  %754 = vmatpush.msra.mxu0 %v488
  %755 = vmatpush.msra.mxu0 %v486
  %756 = vmatpush.msra.mxu0 %v484
  %757 = vmatpush.msra.mxu0 %v482
  %758 = vmatpush.msra.mxu0 %v480
  %759 = vmatpush.msra.mxu0 %v478
  %760 = vmatpush.msra.mxu0 %v476
  %761 = vmatmul.f32.gmra.mxu0 %v451
  %v762 = vpop.f32.mrf.mxu0
  %v763 = vadd.f32 0.0, %v762
  %764 = vmatmul.f32.gmra.mxu0 %v452
  %v765 = vpop.f32.mrf.mxu0
  %v766 = vadd.f32 0.0, %v765
  %767 = vmatmul.f32.gmra.mxu0 %v453
  %v768 = vpop.f32.mrf.mxu0
  %v769 = vadd.f32 0.0, %v768
  %770 = vmatmul.f32.gmra.mxu0 %v454
  %v771 = vpop.f32.mrf.mxu0
  %v772 = vadd.f32 0.0, %v771
  %773 = vmatmul.f32.gmra.mxu0 %v455
  %v774 = vpop.f32.mrf.mxu0
  %v775 = vadd.f32 0.0, %v774
  %776 = vmatmul.f32.gmra.mxu0 %v456
  %v777 = vpop.f32.mrf.mxu0
  %v778 = vadd.f32 0.0, %v777
  %779 = vmatmul.f32.gmra.mxu0 %v457
  %v780 = vpop.f32.mrf.mxu0
  %v781 = vadd.f32 0.0, %v780
  %782 = vmatmul.f32.gmra.mxu0 %v458
  %v783 = vpop.f32.mrf.mxu0
  %v784 = vadd.f32 0.0, %v783
  %785 = vmatmul.f32.gmra.mxu0 %v459
  %v786 = vpop.f32.mrf.mxu0
  %v787 = vadd.f32 0.0, %v786
  %788 = vmatmul.f32.gmra.mxu0 %v460
  %v789 = vpop.f32.mrf.mxu0
  %v790 = vadd.f32 0.0, %v789
  %791 = vmatmul.f32.gmra.mxu0 %v461
  %v792 = vpop.f32.mrf.mxu0
  %v793 = vadd.f32 0.0, %v792
  %794 = vmatmul.f32.gmra.mxu0 %v462
  %v795 = vpop.f32.mrf.mxu0
  %v796 = vadd.f32 0.0, %v795
  %797 = vmatmul.f32.gmra.mxu0 %v463
  %v798 = vpop.f32.mrf.mxu0
  %v799 = vadd.f32 0.0, %v798
  %800 = vmatmul.f32.gmra.mxu0 %v464
  %v801 = vpop.f32.mrf.mxu0
  %v802 = vadd.f32 0.0, %v801
  %803 = vmatmul.f32.gmra.mxu0 %v465
  %v804 = vpop.f32.mrf.mxu0
  %v805 = vadd.f32 0.0, %v804
  %806 = vmatmul.f32.gmra.mxu0 %v466
  %v807 = vpop.f32.mrf.mxu0
  %v808 = vadd.f32 0.0, %v807
  %809 = vmatmul.f32.gmra.mxu0 %v467
  %v810 = vpop.f32.mrf.mxu0
  %v811 = vadd.f32 0.0, %v810
  %812 = vmatmul.f32.gmra.mxu0 %v468
  %v813 = vpop.f32.mrf.mxu0
  %v814 = vadd.f32 0.0, %v813
  %815 = vmatmul.f32.gmra.mxu0 %v469
  %v816 = vpop.f32.mrf.mxu0
  %v817 = vadd.f32 0.0, %v816
  %818 = vmatmul.f32.gmra.mxu0 %v470
  %v819 = vpop.f32.mrf.mxu0
  %v820 = vadd.f32 0.0, %v819
  %821 = vmatmul.f32.gmra.mxu0 %v471
  %v822 = vpop.f32.mrf.mxu0
  %v823 = vadd.f32 0.0, %v822
  %824 = vmatmul.f32.gmra.mxu0 %v472
  %v825 = vpop.f32.mrf.mxu0
  %v826 = vadd.f32 0.0, %v825
  %827 = vmatmul.f32.gmra.mxu0 %v473
  %v828 = vpop.f32.mrf.mxu0
  %v829 = vadd.f32 0.0, %v828
  %830 = vmatmul.f32.gmra.mxu0 %v474
  %v831 = vpop.f32.mrf.mxu0
  %v832 = vadd.f32 0.0, %v831
  %833 = vdwg.mxu0
  %834 = vmatpush.msra.mxu0 0.0
  %835 = vmatpush.msra.mxu0 0.0
  %836 = vmatpush.msra.mxu0 0.0
  %837 = vmatpush.msra.mxu0 0.0
  %838 = vmatpush.msra.mxu0 0.0
  %839 = vmatpush.msra.mxu0 0.0
  %840 = vmatpush.msra.mxu0 0.0
  %841 = vmatpush.msra.mxu0 0.0
  %842 = vmatpush.msra.mxu0 0.0
  %843 = vmatpush.msra.mxu0 0.0
  %844 = vmatpush.msra.mxu0 0.0
  %845 = vmatpush.msra.mxu0 0.0
  %846 = vmatpush.msra.mxu0 0.0
  %847 = vmatpush.msra.mxu0 0.0
  %848 = vmatpush.msra.mxu0 %v565
  %849 = vmatpush.msra.mxu0 %v508
  %850 = vmatmul.f32.gmra.mxu0 %v512
  %v851 = vpop.f32.mrf.mxu0
  %v852 = vadd.f32 %v763, %v851
  %853 = vmatmul.f32.gmra.mxu0 %v514
  %v854 = vpop.f32.mrf.mxu0
  %v855 = vadd.f32 %v766, %v854
  %856 = vmatmul.f32.gmra.mxu0 %v516
  %v857 = vpop.f32.mrf.mxu0
  %v858 = vadd.f32 %v769, %v857
  %859 = vmatmul.f32.gmra.mxu0 %v518
  %v860 = vpop.f32.mrf.mxu0
  %v861 = vadd.f32 %v772, %v860
  %862 = vmatmul.f32.gmra.mxu0 %v520
  %v863 = vpop.f32.mrf.mxu0
  %v864 = vadd.f32 %v775, %v863
  %865 = vmatmul.f32.gmra.mxu0 %v522
  %v866 = vpop.f32.mrf.mxu0
  %v867 = vadd.f32 %v778, %v866
  %868 = vmatmul.f32.gmra.mxu0 %v524
  %v869 = vpop.f32.mrf.mxu0
  %v870 = vadd.f32 %v781, %v869
  %871 = vmatmul.f32.gmra.mxu0 %v526
  %v872 = vpop.f32.mrf.mxu0
  %v873 = vadd.f32 %v784, %v872
  %874 = vmatmul.f32.gmra.mxu0 %v528
  %v875 = vpop.f32.mrf.mxu0
  %v876 = vadd.f32 %v787, %v875
  %877 = vmatmul.f32.gmra.mxu0 %v530
  %v878 = vpop.f32.mrf.mxu0
  %v879 = vadd.f32 %v790, %v878
  %880 = vmatmul.f32.gmra.mxu0 %v532
  %v881 = vpop.f32.mrf.mxu0
  %v882 = vadd.f32 %v793, %v881
  %883 = vmatmul.f32.gmra.mxu0 %v534
  %v884 = vpop.f32.mrf.mxu0
  %v885 = vadd.f32 %v796, %v884
  %886 = vmatmul.f32.gmra.mxu0 %v536
  %v887 = vpop.f32.mrf.mxu0
  %v888 = vadd.f32 %v799, %v887
  %889 = vmatmul.f32.gmra.mxu0 %v538
  %v890 = vpop.f32.mrf.mxu0
  %v891 = vadd.f32 %v802, %v890
  %892 = vmatmul.f32.gmra.mxu0 %v540
  %v893 = vpop.f32.mrf.mxu0
  %v894 = vadd.f32 %v805, %v893
  %895 = vmatmul.f32.gmra.mxu0 %v542
  %v896 = vpop.f32.mrf.mxu0
  %v897 = vadd.f32 %v808, %v896
  %898 = vmatmul.f32.gmra.mxu0 %v544
  %v899 = vpop.f32.mrf.mxu0
  %v900 = vadd.f32 %v811, %v899
  %901 = vmatmul.f32.gmra.mxu0 %v546
  %v902 = vpop.f32.mrf.mxu0
  %v903 = vadd.f32 %v814, %v902
  %904 = vmatmul.f32.gmra.mxu0 %v548
  %v905 = vpop.f32.mrf.mxu0
  %v906 = vadd.f32 %v817, %v905
  %907 = vmatmul.f32.gmra.mxu0 %v550
  %v908 = vpop.f32.mrf.mxu0
  %v909 = vadd.f32 %v820, %v908
  %910 = vmatmul.f32.gmra.mxu0 %v552
  %v911 = vpop.f32.mrf.mxu0
  %v912 = vadd.f32 %v823, %v911
  %913 = vmatmul.f32.gmra.mxu0 %v554
  %v914 = vpop.f32.mrf.mxu0
  %v915 = vadd.f32 %v826, %v914
  %916 = vmatmul.f32.gmra.mxu0 %v556
  %v917 = vpop.f32.mrf.mxu0
  %v918 = vadd.f32 %v829, %v917
  %919 = vmatmul.f32.gmra.mxu0 %v558
  %v920 = vpop.f32.mrf.mxu0
  %v921 = vadd.f32 %v832, %v920
  %922 = vdwg.mxu0
  %v923 = vmax.f32 %v674, %v677
  %v924 = vmax.f32 %v852, %v855
  %927 = vrot.lane.b32.xlu0 %v923, 8
  %v928 = vpop.permute.xlu0 %927
  %929 = vrot.lane.b32.xlu0 %v924, 8
  %v930 = vpop.permute.xlu0 %929
  %vm931 = vcmask 64512
  %v932 = vsel %vm931, %v928, %v930
  %v934 = vmax.f32 %v923, %v932
  %v935 = vld [vmem:[%s2] sm:$0x1]
  %v937 = vperm.slane %v935, 0
  %v939 = vadd.f32 %v934, %v937
  %v940 = vmax.f32 %v939, 0.0
  %v941 = vmax.f32 %v680, %v683
  %v942 = vmax.f32 %v858, %v861
  %945 = vrot.lane.b32.xlu0 %v941, 8
  %v946 = vpop.permute.xlu0 %945
  %947 = vrot.lane.b32.xlu0 %v942, 8
  %v948 = vpop.permute.xlu0 %947
  %v949 = vsel %vm931, %v946, %v948
  %v951 = vmax.f32 %v941, %v949
  %v952 = vadd.f32 %v951, %v937
  %v953 = vmax.f32 %v952, 0.0
  %v954 = vmax.f32 %v686, %v689
  %v955 = vmax.f32 %v864, %v867
  %958 = vrot.lane.b32.xlu0 %v954, 8
  %v959 = vpop.permute.xlu0 %958
  %960 = vrot.lane.b32.xlu0 %v955, 8
  %v961 = vpop.permute.xlu0 %960
  %v962 = vsel %vm931, %v959, %v961
  %v964 = vmax.f32 %v954, %v962
  %v965 = vadd.f32 %v964, %v937
  %v966 = vmax.f32 %v965, 0.0
  %v967 = vmax.f32 %v692, %v695
  %v968 = vmax.f32 %v870, %v873
  %971 = vrot.lane.b32.xlu0 %v967, 8
  %v972 = vpop.permute.xlu0 %971
  %973 = vrot.lane.b32.xlu0 %v968, 8
  %v974 = vpop.permute.xlu0 %973
  %v975 = vsel %vm931, %v972, %v974
  %v977 = vmax.f32 %v967, %v975
  %v978 = vadd.f32 %v977, %v937
  %v979 = vmax.f32 %v978, 0.0
  %v980 = vmax.f32 %v698, %v701
  %v981 = vmax.f32 %v876, %v879
  %984 = vrot.lane.b32.xlu0 %v980, 8
  %v985 = vpop.permute.xlu0 %984
  %986 = vrot.lane.b32.xlu0 %v981, 8
  %v987 = vpop.permute.xlu0 %986
  %v988 = vsel %vm931, %v985, %v987
  %v990 = vmax.f32 %v980, %v988
  %v991 = vadd.f32 %v990, %v937
  %v992 = vmax.f32 %v991, 0.0
  %v993 = vmax.f32 %v704, %v707
  %v994 = vmax.f32 %v882, %v885
  %997 = vrot.lane.b32.xlu0 %v993, 8
  %v998 = vpop.permute.xlu0 %997
  %999 = vrot.lane.b32.xlu0 %v994, 8
  %v1000 = vpop.permute.xlu0 %999
  %v1001 = vsel %vm931, %v998, %v1000
  %v1003 = vmax.f32 %v993, %v1001
  %v1004 = vadd.f32 %v1003, %v937
  %v1005 = vmax.f32 %v1004, 0.0
  %v1006 = vmax.f32 %v710, %v713
  %v1007 = vmax.f32 %v888, %v891
  %1010 = vrot.lane.b32.xlu0 %v1006, 8
  %v1011 = vpop.permute.xlu0 %1010
  %1012 = vrot.lane.b32.xlu0 %v1007, 8
  %v1013 = vpop.permute.xlu0 %1012
  %v1014 = vsel %vm931, %v1011, %v1013
  %v1016 = vmax.f32 %v1006, %v1014
  %v1017 = vadd.f32 %v1016, %v937
  %v1018 = vmax.f32 %v1017, 0.0
  %v1019 = vmax.f32 %v716, %v719
  %v1020 = vmax.f32 %v894, %v897
  %1023 = vrot.lane.b32.xlu0 %v1019, 8
  %v1024 = vpop.permute.xlu0 %1023
  %1025 = vrot.lane.b32.xlu0 %v1020, 8
  %v1026 = vpop.permute.xlu0 %1025
  %v1027 = vsel %vm931, %v1024, %v1026
  %v1029 = vmax.f32 %v1019, %v1027
  %v1030 = vadd.f32 %v1029, %v937
  %v1031 = vmax.f32 %v1030, 0.0
  %v1032 = vmax.f32 %v722, %v725
  %v1033 = vmax.f32 %v900, %v903
  %1036 = vrot.lane.b32.xlu0 %v1032, 8
  %v1037 = vpop.permute.xlu0 %1036
  %1038 = vrot.lane.b32.xlu0 %v1033, 8
  %v1039 = vpop.permute.xlu0 %1038
  %v1040 = vsel %vm931, %v1037, %v1039
  %v1042 = vmax.f32 %v1032, %v1040
  %v1043 = vadd.f32 %v1042, %v937
  %v1044 = vmax.f32 %v1043, 0.0
  %v1045 = vmax.f32 %v728, %v731
  %v1046 = vmax.f32 %v906, %v909
  %1049 = vrot.lane.b32.xlu0 %v1045, 8
  %v1050 = vpop.permute.xlu0 %1049
  %1051 = vrot.lane.b32.xlu0 %v1046, 8
  %v1052 = vpop.permute.xlu0 %1051
  %v1053 = vsel %vm931, %v1050, %v1052
  %v1055 = vmax.f32 %v1045, %v1053
  %v1056 = vadd.f32 %v1055, %v937
  %v1057 = vmax.f32 %v1056, 0.0
  %v1058 = vmax.f32 %v734, %v737
  %v1059 = vmax.f32 %v912, %v915
  %1062 = vrot.lane.b32.xlu0 %v1058, 8
  %v1063 = vpop.permute.xlu0 %1062
  %1064 = vrot.lane.b32.xlu0 %v1059, 8
  %v1065 = vpop.permute.xlu0 %1064
  %v1066 = vsel %vm931, %v1063, %v1065
  %v1068 = vmax.f32 %v1058, %v1066
  %v1069 = vadd.f32 %v1068, %v937
  %v1070 = vmax.f32 %v1069, 0.0
  %v1071 = vmax.f32 %v740, %v743
  %v1072 = vmax.f32 %v918, %v921
  %1075 = vrot.lane.b32.xlu0 %v1071, 8
  %v1076 = vpop.permute.xlu0 %1075
  %1077 = vrot.lane.b32.xlu0 %v1072, 8
  %v1078 = vpop.permute.xlu0 %1077
  %v1079 = vsel %vm931, %v1076, %v1078
  %v1081 = vmax.f32 %v1071, %v1079
  %v1082 = vadd.f32 %v1081, %v937
  %v1083 = vmax.f32 %v1082, 0.0
  %1092 = vrot.lane.b32.xlu0 %v953, 120
  %v1093 = vpop.permute.xlu0 %1092
  %1094 = vrot.lane.b32.xlu0 %v966, 120
  %v1095 = vpop.permute.xlu0 %1094
  %1096 = vrot.lane.b32.xlu0 %v979, 120
  %v1097 = vpop.permute.xlu0 %1096
  %1098 = vrot.lane.b32.xlu0 %v992, 120
  %v1099 = vpop.permute.xlu0 %1098
  %1100 = vrot.lane.b32.xlu0 %v1005, 120
  %v1101 = vpop.permute.xlu0 %1100
  %1102 = vrot.lane.b32.xlu0 %v1018, 120
  %v1103 = vpop.permute.xlu0 %1102
  %1104 = vrot.lane.b32.xlu0 %v1031, 120
  %v1105 = vpop.permute.xlu0 %1104
  %1106 = vrot.lane.b32.xlu0 %v1044, 120
  %v1107 = vpop.permute.xlu0 %1106
  %1117 = vrot.lane.b32.xlu0 %v966, 112
  %v1118 = vpop.permute.xlu0 %1117
  %1119 = vrot.lane.b32.xlu0 %v979, 112
  %v1120 = vpop.permute.xlu0 %1119
  %1121 = vrot.lane.b32.xlu0 %v992, 112
  %v1122 = vpop.permute.xlu0 %1121
  %1123 = vrot.lane.b32.xlu0 %v1005, 112
  %v1124 = vpop.permute.xlu0 %1123
  %1125 = vrot.lane.b32.xlu0 %v1018, 112
  %v1126 = vpop.permute.xlu0 %1125
  %1127 = vrot.lane.b32.xlu0 %v1031, 112
  %v1128 = vpop.permute.xlu0 %1127
  %1129 = vrot.lane.b32.xlu0 %v1044, 112
  %v1130 = vpop.permute.xlu0 %1129
  %1131 = vrot.lane.b32.xlu0 %v1057, 112
  %v1132 = vpop.permute.xlu0 %1131
  %1142 = vrot.lane.b32.xlu0 %v979, 104
  %v1143 = vpop.permute.xlu0 %1142
  %1144 = vrot.lane.b32.xlu0 %v992, 104
  %v1145 = vpop.permute.xlu0 %1144
  %1146 = vrot.lane.b32.xlu0 %v1005, 104
  %v1147 = vpop.permute.xlu0 %1146
  %1148 = vrot.lane.b32.xlu0 %v1018, 104
  %v1149 = vpop.permute.xlu0 %1148
  %1150 = vrot.lane.b32.xlu0 %v1031, 104
  %v1151 = vpop.permute.xlu0 %1150
  %1152 = vrot.lane.b32.xlu0 %v1044, 104
  %v1153 = vpop.permute.xlu0 %1152
  %1154 = vrot.lane.b32.xlu0 %v1057, 104
  %v1155 = vpop.permute.xlu0 %1154
  %1156 = vrot.lane.b32.xlu0 %v1070, 104
  %v1157 = vpop.permute.xlu0 %1156
  %1167 = vrot.lane.b32.xlu0 %v992, 96
  %v1168 = vpop.permute.xlu0 %1167
  %1169 = vrot.lane.b32.xlu0 %v1005, 96
  %v1170 = vpop.permute.xlu0 %1169
  %1171 = vrot.lane.b32.xlu0 %v1018, 96
  %v1172 = vpop.permute.xlu0 %1171
  %1173 = vrot.lane.b32.xlu0 %v1031, 96
  %v1174 = vpop.permute.xlu0 %1173
  %1175 = vrot.lane.b32.xlu0 %v1044, 96
  %v1176 = vpop.permute.xlu0 %1175
  %1177 = vrot.lane.b32.xlu0 %v1057, 96
  %v1178 = vpop.permute.xlu0 %1177
  %1179 = vrot.lane.b32.xlu0 %v1070, 96
  %v1180 = vpop.permute.xlu0 %1179
  %1181 = vrot.lane.b32.xlu0 %v1083, 96
  %v1182 = vpop.permute.xlu0 %1181
  %vm1191 = vcmask 982016
  %v1192 = vsel %vm1191, %v940, %v1093
  %v1193 = vsel %vm1191, %v953, %v1095
  %v1194 = vsel %vm1191, %v966, %v1097
  %v1195 = vsel %vm1191, %v979, %v1099
  %v1196 = vsel %vm1191, %v992, %v1101
  %v1197 = vsel %vm1191, %v1005, %v1103
  %v1198 = vsel %vm1191, %v1018, %v1105
  %v1199 = vsel %vm1191, %v1031, %v1107
  %v1200 = vsel %vm450, %v1093, %v1118
  %v1201 = vsel %vm450, %v1095, %v1120
  %v1202 = vsel %vm450, %v1097, %v1122
  %v1203 = vsel %vm450, %v1099, %v1124
  %v1204 = vsel %vm450, %v1101, %v1126
  %v1205 = vsel %vm450, %v1103, %v1128
  %v1206 = vsel %vm450, %v1105, %v1130
  %v1207 = vsel %vm450, %v1107, %v1132
  %vm1208 = vcmask 850944
  %v1209 = vsel %vm1208, %v1118, %v1143
  %v1210 = vsel %vm1208, %v1120, %v1145
  %v1211 = vsel %vm1208, %v1122, %v1147
  %v1212 = vsel %vm1208, %v1124, %v1149
  %v1213 = vsel %vm1208, %v1126, %v1151
  %v1214 = vsel %vm1208, %v1128, %v1153
  %v1215 = vsel %vm1208, %v1130, %v1155
  %v1216 = vsel %vm1208, %v1132, %v1157
  %vm1217 = vcmask 785408
  %v1218 = vsel %vm1217, %v1143, %v1168
  %v1219 = vsel %vm1217, %v1145, %v1170
  %v1220 = vsel %vm1217, %v1147, %v1172
  %v1221 = vsel %vm1217, %v1149, %v1174
  %v1222 = vsel %vm1217, %v1151, %v1176
  %v1223 = vsel %vm1217, %v1153, %v1178
  %v1224 = vsel %vm1217, %v1155, %v1180
  %v1225 = vsel %vm1217, %v1157, %v1182
  %v1226 = vld [vmem:[%s3] sm:$0xff]
  %v1227 = vld [vmem:[%s3 + $0x8] sm:$0xff]
  %v1228 = vld [vmem:[%s3 + $0x10] sm:$0xff]
  %v1229 = vld [vmem:[%s3 + $0x18] sm:$0xff]
  %v1230 = vld [vmem:[%s3 + $0x20] sm:$0xff]
  %v1231 = vld [vmem:[%s3 + $0x28] sm:$0xff]
  %v1232 = vld [vmem:[%s3 + $0x30] sm:$0xff]
  %v1233 = vld [vmem:[%s3 + $0x38] sm:$0xff]
  %v1234 = vld [vmem:[%s3 + $0x40] sm:$0xff]
  %v1235 = vld [vmem:[%s3 + $0x48] sm:$0xff]
  %v1236 = vld [vmem:[%s3 + $0x50] sm:$0xff]
  %v1237 = vld [vmem:[%s3 + $0x58] sm:$0xff]
  %v1238 = vld [vmem:[%s3 + $0x60] sm:$0xff]
  %v1239 = vld [vmem:[%s3 + $0x68] sm:$0xff]
  %v1240 = vld [vmem:[%s3 + $0x70] sm:$0xff]
  %v1241 = vld [vmem:[%s3 + $0x78] sm:$0xff]
  %v1242 = vld [vmem:[%s3 + $0x80] sm:$0xff]
  %v1243 = vld [vmem:[%s3 + $0x88] sm:$0xff]
  %v1244 = vld [vmem:[%s3 + $0x90] sm:$0xff]
  %v1245 = vld [vmem:[%s3 + $0x98] sm:$0xff]
  %v1246 = vld [vmem:[%s3 + $0xa0] sm:$0xff]
  %v1247 = vld [vmem:[%s3 + $0xa8] sm:$0xff]
  %v1248 = vld [vmem:[%s3 + $0xb0] sm:$0xff]
  %v1249 = vld [vmem:[%s3 + $0xb8] sm:$0xff]
  %v1250 = vld [vmem:[%s3 + $0xc0] sm:$0xff]
  %v1251 = vld [vmem:[%s3 + $0xc8] sm:$0xff]
  %v1252 = vld [vmem:[%s3 + $0xd0] sm:$0xff]
  %v1253 = vld [vmem:[%s3 + $0xd8] sm:$0xff]
  %v1254 = vld [vmem:[%s3 + $0xe0] sm:$0xff]
  %v1255 = vld [vmem:[%s3 + $0xe8] sm:$0xff]
  %v1256 = vld [vmem:[%s3 + $0xf0] sm:$0xff]
  %v1257 = vld [vmem:[%s3 + $0xf8] sm:$0xff]
  %v1258 = vld [vmem:[%s3 + $0x100] sm:$0xff]
  %v1259 = vld [vmem:[%s3 + $0x108] sm:$0xff]
  %v1260 = vld [vmem:[%s3 + $0x110] sm:$0xff]
  %v1261 = vld [vmem:[%s3 + $0x118] sm:$0xff]
  %v1262 = vld [vmem:[%s3 + $0x120] sm:$0xff]
  %v1263 = vld [vmem:[%s3 + $0x128] sm:$0xff]
  %v1264 = vld [vmem:[%s3 + $0x130] sm:$0xff]
  %v1265 = vld [vmem:[%s3 + $0x138] sm:$0xff]
  %v1266 = vld [vmem:[%s3 + $0x140] sm:$0xff]
  %v1267 = vld [vmem:[%s3 + $0x148] sm:$0xff]
  %v1268 = vld [vmem:[%s3 + $0x150] sm:$0xff]
  %v1269 = vld [vmem:[%s3 + $0x158] sm:$0xff]
  %v1270 = vld [vmem:[%s3 + $0x160] sm:$0xff]
  %v1271 = vld [vmem:[%s3 + $0x168] sm:$0xff]
  %v1272 = vld [vmem:[%s3 + $0x170] sm:$0xff]
  %v1273 = vld [vmem:[%s3 + $0x178] sm:$0xff]
  %v1274 = vld [vmem:[%s3 + $0x180] sm:$0xff]
  %v1275 = vld [vmem:[%s3 + $0x188] sm:$0xff]
  %v1276 = vld [vmem:[%s3 + $0x190] sm:$0xff]
  %v1277 = vld [vmem:[%s3 + $0x198] sm:$0xff]
  %v1278 = vld [vmem:[%s3 + $0x1a0] sm:$0xff]
  %v1279 = vld [vmem:[%s3 + $0x1a8] sm:$0xff]
  %v1280 = vld [vmem:[%s3 + $0x1b0] sm:$0xff]
  %v1281 = vld [vmem:[%s3 + $0x1b8] sm:$0xff]
  %v1282 = vld [vmem:[%s3 + $0x1c0] sm:$0xff]
  %v1283 = vld [vmem:[%s3 + $0x1c8] sm:$0xff]
  %v1284 = vld [vmem:[%s3 + $0x1d0] sm:$0xff]
  %v1285 = vld [vmem:[%s3 + $0x1d8] sm:$0xff]
  %v1286 = vld [vmem:[%s3 + $0x1e0] sm:$0xff]
  %v1287 = vld [vmem:[%s3 + $0x1e8] sm:$0xff]
  %v1288 = vld [vmem:[%s3 + $0x1f0] sm:$0xff]
  %v1289 = vld [vmem:[%s3 + $0x1f8] sm:$0xff]
  %v1290 = vld [vmem:[%s3 + $0x200] sm:$0xff]
  %v1291 = vld [vmem:[%s3 + $0x208] sm:$0xff]
  %v1292 = vld [vmem:[%s3 + $0x210] sm:$0xff]
  %v1293 = vld [vmem:[%s3 + $0x218] sm:$0xff]
  %v1294 = vld [vmem:[%s3 + $0x220] sm:$0xff]
  %v1295 = vld [vmem:[%s3 + $0x228] sm:$0xff]
  %v1296 = vld [vmem:[%s3 + $0x230] sm:$0xff]
  %v1297 = vld [vmem:[%s3 + $0x238] sm:$0xff]
  %v1298 = vld [vmem:[%s3 + $0x240] sm:$0xff]
  %v1299 = vld [vmem:[%s3 + $0x248] sm:$0xff]
  %v1300 = vld [vmem:[%s3 + $0x250] sm:$0xff]
  %v1301 = vld [vmem:[%s3 + $0x258] sm:$0xff]
  %v1302 = vld [vmem:[%s3 + $0x260] sm:$0xff]
  %v1303 = vld [vmem:[%s3 + $0x268] sm:$0xff]
  %v1304 = vld [vmem:[%s3 + $0x270] sm:$0xff]
  %v1305 = vld [vmem:[%s3 + $0x278] sm:$0xff]
  %v1306 = vld [vmem:[%s3 + $0x280] sm:$0xff]
  %v1307 = vld [vmem:[%s3 + $0x288] sm:$0xff]
  %v1308 = vld [vmem:[%s3 + $0x290] sm:$0xff]
  %v1309 = vld [vmem:[%s3 + $0x298] sm:$0xff]
  %v1310 = vld [vmem:[%s3 + $0x2a0] sm:$0xff]
  %v1311 = vld [vmem:[%s3 + $0x2a8] sm:$0xff]
  %v1312 = vld [vmem:[%s3 + $0x2b0] sm:$0xff]
  %v1313 = vld [vmem:[%s3 + $0x2b8] sm:$0xff]
  %v1314 = vld [vmem:[%s3 + $0x2c0] sm:$0xff]
  %v1315 = vld [vmem:[%s3 + $0x2c8] sm:$0xff]
  %v1316 = vld [vmem:[%s3 + $0x2d0] sm:$0xff]
  %v1317 = vld [vmem:[%s3 + $0x2d8] sm:$0xff]
  %v1318 = vld [vmem:[%s3 + $0x2e0] sm:$0xff]
  %v1319 = vld [vmem:[%s3 + $0x2e8] sm:$0xff]
  %v1320 = vld [vmem:[%s3 + $0x2f0] sm:$0xff]
  %v1321 = vld [vmem:[%s3 + $0x2f8] sm:$0xff]
  %v1322 = vld [vmem:[%s3 + $0x300] sm:$0xff]
  %v1323 = vld [vmem:[%s3 + $0x308] sm:$0xff]
  %v1324 = vld [vmem:[%s3 + $0x310] sm:$0xff]
  %v1325 = vld [vmem:[%s3 + $0x318] sm:$0xff]
  %v1326 = vld [vmem:[%s3 + $0x320] sm:$0xff]
  %v1327 = vld [vmem:[%s3 + $0x328] sm:$0xff]
  %v1328 = vld [vmem:[%s3 + $0x330] sm:$0xff]
  %v1329 = vld [vmem:[%s3 + $0x338] sm:$0xff]
  %v1330 = vld [vmem:[%s3 + $0x340] sm:$0xff]
  %v1331 = vld [vmem:[%s3 + $0x348] sm:$0xff]
  %v1332 = vld [vmem:[%s3 + $0x350] sm:$0xff]
  %v1333 = vld [vmem:[%s3 + $0x358] sm:$0xff]
  %v1334 = vld [vmem:[%s3 + $0x360] sm:$0xff]
  %v1335 = vld [vmem:[%s3 + $0x368] sm:$0xff]
  %v1336 = vld [vmem:[%s3 + $0x370] sm:$0xff]
  %v1337 = vld [vmem:[%s3 + $0x378] sm:$0xff]
  %v1338 = vld [vmem:[%s3 + $0x380] sm:$0xff]
  %v1339 = vld [vmem:[%s3 + $0x388] sm:$0xff]
  %v1340 = vld [vmem:[%s3 + $0x390] sm:$0xff]
  %v1341 = vld [vmem:[%s3 + $0x398] sm:$0xff]
  %v1342 = vld [vmem:[%s3 + $0x3a0] sm:$0xff]
  %v1343 = vld [vmem:[%s3 + $0x3a8] sm:$0xff]
  %v1344 = vld [vmem:[%s3 + $0x3b0] sm:$0xff]
  %v1345 = vld [vmem:[%s3 + $0x3b8] sm:$0xff]
  %v1346 = vld [vmem:[%s3 + $0x3c0] sm:$0xff]
  %v1347 = vld [vmem:[%s3 + $0x3c8] sm:$0xff]
  %v1348 = vld [vmem:[%s3 + $0x3d0] sm:$0xff]
  %v1349 = vld [vmem:[%s3 + $0x3d8] sm:$0xff]
  %v1350 = vld [vmem:[%s3 + $0x3e0] sm:$0xff]
  %v1351 = vld [vmem:[%s3 + $0x3e8] sm:$0xff]
  %v1352 = vld [vmem:[%s3 + $0x3f0] sm:$0xff]
  %v1353 = vld [vmem:[%s3 + $0x3f8] sm:$0xff]
  %v1354 = vld [vmem:[%s3 + $0x400] sm:$0xff]
  %v1355 = vld [vmem:[%s3 + $0x408] sm:$0xff]
  %v1356 = vld [vmem:[%s3 + $0x410] sm:$0xff]
  %v1357 = vld [vmem:[%s3 + $0x418] sm:$0xff]
  %v1358 = vld [vmem:[%s3 + $0x420] sm:$0xff]
  %v1359 = vld [vmem:[%s3 + $0x428] sm:$0xff]
  %v1360 = vld [vmem:[%s3 + $0x430] sm:$0xff]
  %v1361 = vld [vmem:[%s3 + $0x438] sm:$0xff]
  %v1362 = vld [vmem:[%s3 + $0x440] sm:$0xff]
  %v1363 = vld [vmem:[%s3 + $0x448] sm:$0xff]
  %v1364 = vld [vmem:[%s3 + $0x450] sm:$0xff]
  %v1365 = vld [vmem:[%s3 + $0x458] sm:$0xff]
  %v1366 = vld [vmem:[%s3 + $0x460] sm:$0xff]
  %v1367 = vld [vmem:[%s3 + $0x468] sm:$0xff]
  %v1368 = vld [vmem:[%s3 + $0x470] sm:$0xff]
  %v1369 = vld [vmem:[%s3 + $0x478] sm:$0xff]
  %v1370 = vld [vmem:[%s3 + $0x480] sm:$0xff]
  %v1371 = vld [vmem:[%s3 + $0x488] sm:$0xff]
  %v1372 = vld [vmem:[%s3 + $0x490] sm:$0xff]
  %v1373 = vld [vmem:[%s3 + $0x498] sm:$0xff]
  %v1374 = vld [vmem:[%s3 + $0x4a0] sm:$0xff]
  %v1375 = vld [vmem:[%s3 + $0x4a8] sm:$0xff]
  %vm1376 = vcmask 719872
  %v1377 = vsel %vm1376, %v1168, 0
  %v1379 = vsel %vm1376, %v1170, 0
  %v1381 = vsel %vm1376, %v1172, 0
  %v1383 = vsel %vm1376, %v1174, 0
  %v1385 = vsel %vm1376, %v1176, 0
  %v1387 = vsel %vm1376, %v1178, 0
  %v1389 = vsel %vm1376, %v1180, 0
  %v1391 = vsel %vm1376, %v1182, 0
  %1393 = vmatpush.msra.mxu0 %v1256
  %1394 = vmatpush.msra.mxu0 %v1254
  %1395 = vmatpush.msra.mxu0 %v1252
  %1396 = vmatpush.msra.mxu0 %v1250
  %1397 = vmatpush.msra.mxu0 %v1248
  %1398 = vmatpush.msra.mxu0 %v1246
  %1399 = vmatpush.msra.mxu0 %v1244
  %1400 = vmatpush.msra.mxu0 %v1242
  %1401 = vmatpush.msra.mxu0 %v1240
  %1402 = vmatpush.msra.mxu0 %v1238
  %1403 = vmatpush.msra.mxu0 %v1236
  %1404 = vmatpush.msra.mxu0 %v1234
  %1405 = vmatpush.msra.mxu0 %v1232
  %1406 = vmatpush.msra.mxu0 %v1230
  %1407 = vmatpush.msra.mxu0 %v1228
  %1408 = vmatpush.msra.mxu0 %v1226
  %1409 = vmatmul.f32.gmra.mxu0 %v1192
  %v1410 = vpop.f32.mrf.mxu0
  %v1411 = vadd.f32 0.0, %v1410
  %1412 = vmatmul.f32.gmra.mxu0 %v1193
  %v1413 = vpop.f32.mrf.mxu0
  %v1414 = vadd.f32 0.0, %v1413
  %1415 = vmatmul.f32.gmra.mxu0 %v1194
  %v1416 = vpop.f32.mrf.mxu0
  %v1417 = vadd.f32 0.0, %v1416
  %1418 = vmatmul.f32.gmra.mxu0 %v1195
  %v1419 = vpop.f32.mrf.mxu0
  %v1420 = vadd.f32 0.0, %v1419
  %1421 = vmatmul.f32.gmra.mxu0 %v1196
  %v1422 = vpop.f32.mrf.mxu0
  %v1423 = vadd.f32 0.0, %v1422
  %1424 = vmatmul.f32.gmra.mxu0 %v1197
  %v1425 = vpop.f32.mrf.mxu0
  %v1426 = vadd.f32 0.0, %v1425
  %1427 = vmatmul.f32.gmra.mxu0 %v1198
  %v1428 = vpop.f32.mrf.mxu0
  %v1429 = vadd.f32 0.0, %v1428
  %1430 = vmatmul.f32.gmra.mxu0 %v1199
  %v1431 = vpop.f32.mrf.mxu0
  %v1432 = vadd.f32 0.0, %v1431
  %1433 = vdwg.mxu0
  %1434 = vmatpush.msra.mxu0 %v1288
  %1435 = vmatpush.msra.mxu0 %v1286
  %1436 = vmatpush.msra.mxu0 %v1284
  %1437 = vmatpush.msra.mxu0 %v1282
  %1438 = vmatpush.msra.mxu0 %v1280
  %1439 = vmatpush.msra.mxu0 %v1278
  %1440 = vmatpush.msra.mxu0 %v1276
  %1441 = vmatpush.msra.mxu0 %v1274
  %1442 = vmatpush.msra.mxu0 %v1272
  %1443 = vmatpush.msra.mxu0 %v1270
  %1444 = vmatpush.msra.mxu0 %v1268
  %1445 = vmatpush.msra.mxu0 %v1266
  %1446 = vmatpush.msra.mxu0 %v1264
  %1447 = vmatpush.msra.mxu0 %v1262
  %1448 = vmatpush.msra.mxu0 %v1260
  %1449 = vmatpush.msra.mxu0 %v1258
  %1450 = vmatmul.f32.gmra.mxu0 %v1200
  %v1451 = vpop.f32.mrf.mxu0
  %v1452 = vadd.f32 %v1411, %v1451
  %1453 = vmatmul.f32.gmra.mxu0 %v1201
  %v1454 = vpop.f32.mrf.mxu0
  %v1455 = vadd.f32 %v1414, %v1454
  %1456 = vmatmul.f32.gmra.mxu0 %v1202
  %v1457 = vpop.f32.mrf.mxu0
  %v1458 = vadd.f32 %v1417, %v1457
  %1459 = vmatmul.f32.gmra.mxu0 %v1203
  %v1460 = vpop.f32.mrf.mxu0
  %v1461 = vadd.f32 %v1420, %v1460
  %1462 = vmatmul.f32.gmra.mxu0 %v1204
  %v1463 = vpop.f32.mrf.mxu0
  %v1464 = vadd.f32 %v1423, %v1463
  %1465 = vmatmul.f32.gmra.mxu0 %v1205
  %v1466 = vpop.f32.mrf.mxu0
  %v1467 = vadd.f32 %v1426, %v1466
  %1468 = vmatmul.f32.gmra.mxu0 %v1206
  %v1469 = vpop.f32.mrf.mxu0
  %v1470 = vadd.f32 %v1429, %v1469
  %1471 = vmatmul.f32.gmra.mxu0 %v1207
  %v1472 = vpop.f32.mrf.mxu0
  %v1473 = vadd.f32 %v1432, %v1472
  %1474 = vdwg.mxu0
  %1475 = vmatpush.msra.mxu0 %v1320
  %1476 = vmatpush.msra.mxu0 %v1318
  %1477 = vmatpush.msra.mxu0 %v1316
  %1478 = vmatpush.msra.mxu0 %v1314
  %1479 = vmatpush.msra.mxu0 %v1312
  %1480 = vmatpush.msra.mxu0 %v1310
  %1481 = vmatpush.msra.mxu0 %v1308
  %1482 = vmatpush.msra.mxu0 %v1306
  %1483 = vmatpush.msra.mxu0 %v1304
  %1484 = vmatpush.msra.mxu0 %v1302
  %1485 = vmatpush.msra.mxu0 %v1300
  %1486 = vmatpush.msra.mxu0 %v1298
  %1487 = vmatpush.msra.mxu0 %v1296
  %1488 = vmatpush.msra.mxu0 %v1294
  %1489 = vmatpush.msra.mxu0 %v1292
  %1490 = vmatpush.msra.mxu0 %v1290
  %1491 = vmatmul.f32.gmra.mxu0 %v1209
  %v1492 = vpop.f32.mrf.mxu0
  %v1493 = vadd.f32 %v1452, %v1492
  %1494 = vmatmul.f32.gmra.mxu0 %v1210
  %v1495 = vpop.f32.mrf.mxu0
  %v1496 = vadd.f32 %v1455, %v1495
  %1497 = vmatmul.f32.gmra.mxu0 %v1211
  %v1498 = vpop.f32.mrf.mxu0
  %v1499 = vadd.f32 %v1458, %v1498
  %1500 = vmatmul.f32.gmra.mxu0 %v1212
  %v1501 = vpop.f32.mrf.mxu0
  %v1502 = vadd.f32 %v1461, %v1501
  %1503 = vmatmul.f32.gmra.mxu0 %v1213
  %v1504 = vpop.f32.mrf.mxu0
  %v1505 = vadd.f32 %v1464, %v1504
  %1506 = vmatmul.f32.gmra.mxu0 %v1214
  %v1507 = vpop.f32.mrf.mxu0
  %v1508 = vadd.f32 %v1467, %v1507
  %1509 = vmatmul.f32.gmra.mxu0 %v1215
  %v1510 = vpop.f32.mrf.mxu0
  %v1511 = vadd.f32 %v1470, %v1510
  %1512 = vmatmul.f32.gmra.mxu0 %v1216
  %v1513 = vpop.f32.mrf.mxu0
  %v1514 = vadd.f32 %v1473, %v1513
  %1515 = vdwg.mxu0
  %1516 = vmatpush.msra.mxu0 %v1352
  %1517 = vmatpush.msra.mxu0 %v1350
  %1518 = vmatpush.msra.mxu0 %v1348
  %1519 = vmatpush.msra.mxu0 %v1346
  %1520 = vmatpush.msra.mxu0 %v1344
  %1521 = vmatpush.msra.mxu0 %v1342
  %1522 = vmatpush.msra.mxu0 %v1340
  %1523 = vmatpush.msra.mxu0 %v1338
  %1524 = vmatpush.msra.mxu0 %v1336
  %1525 = vmatpush.msra.mxu0 %v1334
  %1526 = vmatpush.msra.mxu0 %v1332
  %1527 = vmatpush.msra.mxu0 %v1330
  %1528 = vmatpush.msra.mxu0 %v1328
  %1529 = vmatpush.msra.mxu0 %v1326
  %1530 = vmatpush.msra.mxu0 %v1324
  %1531 = vmatpush.msra.mxu0 %v1322
  %1532 = vmatmul.f32.gmra.mxu0 %v1218
  %v1533 = vpop.f32.mrf.mxu0
  %v1534 = vadd.f32 %v1493, %v1533
  %1535 = vmatmul.f32.gmra.mxu0 %v1219
  %v1536 = vpop.f32.mrf.mxu0
  %v1537 = vadd.f32 %v1496, %v1536
  %1538 = vmatmul.f32.gmra.mxu0 %v1220
  %v1539 = vpop.f32.mrf.mxu0
  %v1540 = vadd.f32 %v1499, %v1539
  %1541 = vmatmul.f32.gmra.mxu0 %v1221
  %v1542 = vpop.f32.mrf.mxu0
  %v1543 = vadd.f32 %v1502, %v1542
  %1544 = vmatmul.f32.gmra.mxu0 %v1222
  %v1545 = vpop.f32.mrf.mxu0
  %v1546 = vadd.f32 %v1505, %v1545
  %1547 = vmatmul.f32.gmra.mxu0 %v1223
  %v1548 = vpop.f32.mrf.mxu0
  %v1549 = vadd.f32 %v1508, %v1548
  %1550 = vmatmul.f32.gmra.mxu0 %v1224
  %v1551 = vpop.f32.mrf.mxu0
  %v1552 = vadd.f32 %v1511, %v1551
  %1553 = vmatmul.f32.gmra.mxu0 %v1225
  %v1554 = vpop.f32.mrf.mxu0
  %v1555 = vadd.f32 %v1514, %v1554
  %1556 = vdwg.mxu0
  %1557 = vmatpush.msra.mxu0 0.0
  %1558 = vmatpush.msra.mxu0 0.0
  %1559 = vmatpush.msra.mxu0 0.0
  %1560 = vmatpush.msra.mxu0 0.0
  %1561 = vmatpush.msra.mxu0 0.0
  %1562 = vmatpush.msra.mxu0 %v1374
  %1563 = vmatpush.msra.mxu0 %v1372
  %1564 = vmatpush.msra.mxu0 %v1370
  %1565 = vmatpush.msra.mxu0 %v1368
  %1566 = vmatpush.msra.mxu0 %v1366
  %1567 = vmatpush.msra.mxu0 %v1364
  %1568 = vmatpush.msra.mxu0 %v1362
  %1569 = vmatpush.msra.mxu0 %v1360
  %1570 = vmatpush.msra.mxu0 %v1358
  %1571 = vmatpush.msra.mxu0 %v1356
  %1572 = vmatpush.msra.mxu0 %v1354
  %1573 = vmatmul.f32.gmra.mxu0 %v1377
  %v1574 = vpop.f32.mrf.mxu0
  %v1575 = vadd.f32 %v1534, %v1574
  %1576 = vmatmul.f32.gmra.mxu0 %v1379
  %v1577 = vpop.f32.mrf.mxu0
  %v1578 = vadd.f32 %v1537, %v1577
  %1579 = vmatmul.f32.gmra.mxu0 %v1381
  %v1580 = vpop.f32.mrf.mxu0
  %v1581 = vadd.f32 %v1540, %v1580
  %1582 = vmatmul.f32.gmra.mxu0 %v1383
  %v1583 = vpop.f32.mrf.mxu0
  %v1584 = vadd.f32 %v1543, %v1583
  %1585 = vmatmul.f32.gmra.mxu0 %v1385
  %v1586 = vpop.f32.mrf.mxu0
  %v1587 = vadd.f32 %v1546, %v1586
  %1588 = vmatmul.f32.gmra.mxu0 %v1387
  %v1589 = vpop.f32.mrf.mxu0
  %v1590 = vadd.f32 %v1549, %v1589
  %1591 = vmatmul.f32.gmra.mxu0 %v1389
  %v1592 = vpop.f32.mrf.mxu0
  %v1593 = vadd.f32 %v1552, %v1592
  %1594 = vmatmul.f32.gmra.mxu0 %v1391
  %v1595 = vpop.f32.mrf.mxu0
  %v1596 = vadd.f32 %v1555, %v1595
  %1597 = vdwg.mxu0
  %1598 = vmatpush.msra.mxu0 %v1257
  %1599 = vmatpush.msra.mxu0 %v1255
  %1600 = vmatpush.msra.mxu0 %v1253
  %1601 = vmatpush.msra.mxu0 %v1251
  %1602 = vmatpush.msra.mxu0 %v1249
  %1603 = vmatpush.msra.mxu0 %v1247
  %1604 = vmatpush.msra.mxu0 %v1245
  %1605 = vmatpush.msra.mxu0 %v1243
  %1606 = vmatpush.msra.mxu0 %v1241
  %1607 = vmatpush.msra.mxu0 %v1239
  %1608 = vmatpush.msra.mxu0 %v1237
  %1609 = vmatpush.msra.mxu0 %v1235
  %1610 = vmatpush.msra.mxu0 %v1233
  %1611 = vmatpush.msra.mxu0 %v1231
  %1612 = vmatpush.msra.mxu0 %v1229
  %1613 = vmatpush.msra.mxu0 %v1227
  %1614 = vmatmul.f32.gmra.mxu0 %v1192
  %v1615 = vpop.f32.mrf.mxu0
  %v1616 = vadd.f32 0.0, %v1615
  %1617 = vmatmul.f32.gmra.mxu0 %v1193
  %v1618 = vpop.f32.mrf.mxu0
  %v1619 = vadd.f32 0.0, %v1618
  %1620 = vmatmul.f32.gmra.mxu0 %v1194
  %v1621 = vpop.f32.mrf.mxu0
  %v1622 = vadd.f32 0.0, %v1621
  %1623 = vmatmul.f32.gmra.mxu0 %v1195
  %v1624 = vpop.f32.mrf.mxu0
  %v1625 = vadd.f32 0.0, %v1624
  %1626 = vmatmul.f32.gmra.mxu0 %v1196
  %v1627 = vpop.f32.mrf.mxu0
  %v1628 = vadd.f32 0.0, %v1627
  %1629 = vmatmul.f32.gmra.mxu0 %v1197
  %v1630 = vpop.f32.mrf.mxu0
  %v1631 = vadd.f32 0.0, %v1630
  %1632 = vmatmul.f32.gmra.mxu0 %v1198
  %v1633 = vpop.f32.mrf.mxu0
  %v1634 = vadd.f32 0.0, %v1633
  %1635 = vmatmul.f32.gmra.mxu0 %v1199
  %v1636 = vpop.f32.mrf.mxu0
  %v1637 = vadd.f32 0.0, %v1636
  %1638 = vdwg.mxu0
  %1639 = vmatpush.msra.mxu0 %v1289
  %1640 = vmatpush.msra.mxu0 %v1287
  %1641 = vmatpush.msra.mxu0 %v1285
  %1642 = vmatpush.msra.mxu0 %v1283
  %1643 = vmatpush.msra.mxu0 %v1281
  %1644 = vmatpush.msra.mxu0 %v1279
  %1645 = vmatpush.msra.mxu0 %v1277
  %1646 = vmatpush.msra.mxu0 %v1275
  %1647 = vmatpush.msra.mxu0 %v1273
  %1648 = vmatpush.msra.mxu0 %v1271
  %1649 = vmatpush.msra.mxu0 %v1269
  %1650 = vmatpush.msra.mxu0 %v1267
  %1651 = vmatpush.msra.mxu0 %v1265
  %1652 = vmatpush.msra.mxu0 %v1263
  %1653 = vmatpush.msra.mxu0 %v1261
  %1654 = vmatpush.msra.mxu0 %v1259
  %1655 = vmatmul.f32.gmra.mxu0 %v1200
  %v1656 = vpop.f32.mrf.mxu0
  %v1657 = vadd.f32 %v1616, %v1656
  %1658 = vmatmul.f32.gmra.mxu0 %v1201
  %v1659 = vpop.f32.mrf.mxu0
  %v1660 = vadd.f32 %v1619, %v1659
  %1661 = vmatmul.f32.gmra.mxu0 %v1202
  %v1662 = vpop.f32.mrf.mxu0
  %v1663 = vadd.f32 %v1622, %v1662
  %1664 = vmatmul.f32.gmra.mxu0 %v1203
  %v1665 = vpop.f32.mrf.mxu0
  %v1666 = vadd.f32 %v1625, %v1665
  %1667 = vmatmul.f32.gmra.mxu0 %v1204
  %v1668 = vpop.f32.mrf.mxu0
  %v1669 = vadd.f32 %v1628, %v1668
  %1670 = vmatmul.f32.gmra.mxu0 %v1205
  %v1671 = vpop.f32.mrf.mxu0
  %v1672 = vadd.f32 %v1631, %v1671
  %1673 = vmatmul.f32.gmra.mxu0 %v1206
  %v1674 = vpop.f32.mrf.mxu0
  %v1675 = vadd.f32 %v1634, %v1674
  %1676 = vmatmul.f32.gmra.mxu0 %v1207
  %v1677 = vpop.f32.mrf.mxu0
  %v1678 = vadd.f32 %v1637, %v1677
  %1679 = vdwg.mxu0
  %1680 = vmatpush.msra.mxu0 %v1321
  %1681 = vmatpush.msra.mxu0 %v1319
  %1682 = vmatpush.msra.mxu0 %v1317
  %1683 = vmatpush.msra.mxu0 %v1315
  %1684 = vmatpush.msra.mxu0 %v1313
  %1685 = vmatpush.msra.mxu0 %v1311
  %1686 = vmatpush.msra.mxu0 %v1309
  %1687 = vmatpush.msra.mxu0 %v1307
  %1688 = vmatpush.msra.mxu0 %v1305
  %1689 = vmatpush.msra.mxu0 %v1303
  %1690 = vmatpush.msra.mxu0 %v1301
  %1691 = vmatpush.msra.mxu0 %v1299
  %1692 = vmatpush.msra.mxu0 %v1297
  %1693 = vmatpush.msra.mxu0 %v1295
  %1694 = vmatpush.msra.mxu0 %v1293
  %1695 = vmatpush.msra.mxu0 %v1291
  %1696 = vmatmul.f32.gmra.mxu0 %v1209
  %v1697 = vpop.f32.mrf.mxu0
  %v1698 = vadd.f32 %v1657, %v1697
  %1699 = vmatmul.f32.gmra.mxu0 %v1210
  %v1700 = vpop.f32.mrf.mxu0
  %v1701 = vadd.f32 %v1660, %v1700
  %1702 = vmatmul.f32.gmra.mxu0 %v1211
  %v1703 = vpop.f32.mrf.mxu0
  %v1704 = vadd.f32 %v1663, %v1703
  %1705 = vmatmul.f32.gmra.mxu0 %v1212
  %v1706 = vpop.f32.mrf.mxu0
  %v1707 = vadd.f32 %v1666, %v1706
  %1708 = vmatmul.f32.gmra.mxu0 %v1213
  %v1709 = vpop.f32.mrf.mxu0
  %v1710 = vadd.f32 %v1669, %v1709
  %1711 = vmatmul.f32.gmra.mxu0 %v1214
  %v1712 = vpop.f32.mrf.mxu0
  %v1713 = vadd.f32 %v1672, %v1712
  %1714 = vmatmul.f32.gmra.mxu0 %v1215
  %v1715 = vpop.f32.mrf.mxu0
  %v1716 = vadd.f32 %v1675, %v1715
  %1717 = vmatmul.f32.gmra.mxu0 %v1216
  %v1718 = vpop.f32.mrf.mxu0
  %v1719 = vadd.f32 %v1678, %v1718
  %1720 = vdwg.mxu0
  %1721 = vmatpush.msra.mxu0 %v1353
  %1722 = vmatpush.msra.mxu0 %v1351
  %1723 = vmatpush.msra.mxu0 %v1349
  %1724 = vmatpush.msra.mxu0 %v1347
  %1725 = vmatpush.msra.mxu0 %v1345
  %1726 = vmatpush.msra.mxu0 %v1343
  %1727 = vmatpush.msra.mxu0 %v1341
  %1728 = vmatpush.msra.mxu0 %v1339
  %1729 = vmatpush.msra.mxu0 %v1337
  %1730 = vmatpush.msra.mxu0 %v1335
  %1731 = vmatpush.msra.mxu0 %v1333
  %1732 = vmatpush.msra.mxu0 %v1331
  %1733 = vmatpush.msra.mxu0 %v1329
  %1734 = vmatpush.msra.mxu0 %v1327
  %1735 = vmatpush.msra.mxu0 %v1325
  %1736 = vmatpush.msra.mxu0 %v1323
  %1737 = vmatmul.f32.gmra.mxu0 %v1218
  %v1738 = vpop.f32.mrf.mxu0
  %v1739 = vadd.f32 %v1698, %v1738
  %1740 = vmatmul.f32.gmra.mxu0 %v1219
  %v1741 = vpop.f32.mrf.mxu0
  %v1742 = vadd.f32 %v1701, %v1741
  %1743 = vmatmul.f32.gmra.mxu0 %v1220
  %v1744 = vpop.f32.mrf.mxu0
  %v1745 = vadd.f32 %v1704, %v1744
  %1746 = vmatmul.f32.gmra.mxu0 %v1221
  %v1747 = vpop.f32.mrf.mxu0
  %v1748 = vadd.f32 %v1707, %v1747
  %1749 = vmatmul.f32.gmra.mxu0 %v1222
  %v1750 = vpop.f32.mrf.mxu0
  %v1751 = vadd.f32 %v1710, %v1750
  %1752 = vmatmul.f32.gmra.mxu0 %v1223
  %v1753 = vpop.f32.mrf.mxu0
  %v1754 = vadd.f32 %v1713, %v1753
  %1755 = vmatmul.f32.gmra.mxu0 %v1224
  %v1756 = vpop.f32.mrf.mxu0
  %v1757 = vadd.f32 %v1716, %v1756
  %1758 = vmatmul.f32.gmra.mxu0 %v1225
  %v1759 = vpop.f32.mrf.mxu0
  %v1760 = vadd.f32 %v1719, %v1759
  %1761 = vdwg.mxu0
  %1762 = vmatpush.msra.mxu0 0.0
  %1763 = vmatpush.msra.mxu0 0.0
  %1764 = vmatpush.msra.mxu0 0.0
  %1765 = vmatpush.msra.mxu0 0.0
  %1766 = vmatpush.msra.mxu0 0.0
  %1767 = vmatpush.msra.mxu0 %v1375
  %1768 = vmatpush.msra.mxu0 %v1373
  %1769 = vmatpush.msra.mxu0 %v1371
  %1770 = vmatpush.msra.mxu0 %v1369
  %1771 = vmatpush.msra.mxu0 %v1367
  %1772 = vmatpush.msra.mxu0 %v1365
  %1773 = vmatpush.msra.mxu0 %v1363
  %1774 = vmatpush.msra.mxu0 %v1361
  %1775 = vmatpush.msra.mxu0 %v1359
  %1776 = vmatpush.msra.mxu0 %v1357
  %1777 = vmatpush.msra.mxu0 %v1355
  %1778 = vmatmul.f32.gmra.mxu0 %v1377
  %v1779 = vpop.f32.mrf.mxu0
  %v1780 = vadd.f32 %v1739, %v1779
  %1781 = vmatmul.f32.gmra.mxu0 %v1379
  %v1782 = vpop.f32.mrf.mxu0
  %v1783 = vadd.f32 %v1742, %v1782
  %1784 = vmatmul.f32.gmra.mxu0 %v1381
  %v1785 = vpop.f32.mrf.mxu0
  %v1786 = vadd.f32 %v1745, %v1785
  %1787 = vmatmul.f32.gmra.mxu0 %v1383
  %v1788 = vpop.f32.mrf.mxu0
  %v1789 = vadd.f32 %v1748, %v1788
  %1790 = vmatmul.f32.gmra.mxu0 %v1385
  %v1791 = vpop.f32.mrf.mxu0
  %v1792 = vadd.f32 %v1751, %v1791
  %1793 = vmatmul.f32.gmra.mxu0 %v1387
  %v1794 = vpop.f32.mrf.mxu0
  %v1795 = vadd.f32 %v1754, %v1794
  %1796 = vmatmul.f32.gmra.mxu0 %v1389
  %v1797 = vpop.f32.mrf.mxu0
  %v1798 = vadd.f32 %v1757, %v1797
  %1799 = vmatmul.f32.gmra.mxu0 %v1391
  %v1800 = vpop.f32.mrf.mxu0
  %v1801 = vadd.f32 %v1760, %v1800
  %1802 = vdwg.mxu0
  %v1803 = vld [vmem:[%s6] sm:$0x1]
  %v1805 = vperm.slane %v1803, 0
  %v1807 = vadd.f32 %v1805, 0.0
  %v1808 = vmax.f32 %v1575, %v1578
  %v1809 = vmax.f32 %v1780, %v1783
  %1812 = vrot.lane.b32.xlu0 %v1808, 48
  %v1813 = vpop.permute.xlu0 %1812
  %1814 = vrot.lane.b32.xlu0 %v1809, 48
  %v1815 = vpop.permute.xlu0 %1814
  %vm1816 = vcmask 392192
  %v1817 = vsel %vm1816, %v1813, %v1815
  %v1819 = vmax.f32 %v1808, %v1817
  %v1820 = vld [vmem:[%s4] sm:$0x1]
  %v1822 = vperm.slane %v1820, 0
  %v1824 = vadd.f32 %v1819, %v1822
  %v1825 = vmax.f32 %v1824, 0.0
  %v1826 = vld [vmem:[%s5] sm:$0xff]
  %v1827 = vld [vmem:[%s5 + $0x8] sm:$0xff]
  %v1828 = vld [vmem:[%s5 + $0x10] sm:$0xff]
  %v1829 = vld [vmem:[%s5 + $0x18] sm:$0xff]
  %v1830 = vld [vmem:[%s5 + $0x20] sm:$0xff]
  %v1831 = vld [vmem:[%s5 + $0x28] sm:$0xff]
  %v1832 = vld [vmem:[%s5 + $0x30] sm:$0xff]
  %v1833 = vld [vmem:[%s5 + $0x38] sm:$0xff]
  %v1834 = vld [vmem:[%s5 + $0x40] sm:$0xff]
  %v1835 = vld [vmem:[%s5 + $0x48] sm:$0xff]
  %vm1836 = vcmask 654336
  %v1838 = vsel %vm1836, %v1825, 0
  %1840 = vmatpush.msra.mxu0 0.0
  %1841 = vmatpush.msra.mxu0 0.0
  %1842 = vmatpush.msra.mxu0 0.0
  %1843 = vmatpush.msra.mxu0 0.0
  %1844 = vmatpush.msra.mxu0 0.0
  %1845 = vmatpush.msra.mxu0 0.0
  %1846 = vmatpush.msra.mxu0 %v1835
  %1847 = vmatpush.msra.mxu0 %v1834
  %1848 = vmatpush.msra.mxu0 %v1833
  %1849 = vmatpush.msra.mxu0 %v1832
  %1850 = vmatpush.msra.mxu0 %v1831
  %1851 = vmatpush.msra.mxu0 %v1830
  %1852 = vmatpush.msra.mxu0 %v1829
  %1853 = vmatpush.msra.mxu0 %v1828
  %1854 = vmatpush.msra.mxu0 %v1827
  %1855 = vmatpush.msra.mxu0 %v1826
  %1856 = vmatmul.f32.gmra.mxu0 %v1838
  %v1857 = vpop.f32.mrf.mxu0
  %v1858 = vadd.f32 0.0, %v1857
  %1859 = vdwg.mxu0
  %v1860 = vadd.f32 %v1807, %v1858
  %v1861 = vmax.f32 %v1581, %v1584
  %v1862 = vmax.f32 %v1786, %v1789
  %1865 = vrot.lane.b32.xlu0 %v1861, 48
  %v1866 = vpop.permute.xlu0 %1865
  %1867 = vrot.lane.b32.xlu0 %v1862, 48
  %v1868 = vpop.permute.xlu0 %1867
  %v1869 = vsel %vm1816, %v1866, %v1868
  %v1871 = vmax.f32 %v1861, %v1869
  %v1872 = vadd.f32 %v1871, %v1822
  %v1873 = vmax.f32 %v1872, 0.0
  %s1874 = scalar_lea.vmem %s5, 80
  %v1875 = vld [vmem:[%s1874] sm:$0xff]
  %v1876 = vld [vmem:[%s1874 + $0x8] sm:$0xff]
  %v1877 = vld [vmem:[%s1874 + $0x10] sm:$0xff]
  %v1878 = vld [vmem:[%s1874 + $0x18] sm:$0xff]
  %v1879 = vld [vmem:[%s1874 + $0x20] sm:$0xff]
  %v1880 = vld [vmem:[%s1874 + $0x28] sm:$0xff]
  %v1881 = vld [vmem:[%s1874 + $0x30] sm:$0xff]
  %v1882 = vld [vmem:[%s1874 + $0x38] sm:$0xff]
  %v1883 = vld [vmem:[%s1874 + $0x40] sm:$0xff]
  %v1884 = vld [vmem:[%s1874 + $0x48] sm:$0xff]
  %v1886 = vsel %vm1836, %v1873, 0
  %1888 = vmatpush.msra.mxu0 0.0
  %1889 = vmatpush.msra.mxu0 0.0
  %1890 = vmatpush.msra.mxu0 0.0
  %1891 = vmatpush.msra.mxu0 0.0
  %1892 = vmatpush.msra.mxu0 0.0
  %1893 = vmatpush.msra.mxu0 0.0
  %1894 = vmatpush.msra.mxu0 %v1884
  %1895 = vmatpush.msra.mxu0 %v1883
  %1896 = vmatpush.msra.mxu0 %v1882
  %1897 = vmatpush.msra.mxu0 %v1881
  %1898 = vmatpush.msra.mxu0 %v1880
  %1899 = vmatpush.msra.mxu0 %v1879
  %1900 = vmatpush.msra.mxu0 %v1878
  %1901 = vmatpush.msra.mxu0 %v1877
  %1902 = vmatpush.msra.mxu0 %v1876
  %1903 = vmatpush.msra.mxu0 %v1875
  %1904 = vmatmul.f32.gmra.mxu0 %v1886
  %v1905 = vpop.f32.mrf.mxu0
  %v1906 = vadd.f32 0.0, %v1905
  %1907 = vdwg.mxu0
  %v1908 = vadd.f32 %v1860, %v1906
  %v1909 = vmax.f32 %v1587, %v1590
  %v1910 = vmax.f32 %v1792, %v1795
  %1913 = vrot.lane.b32.xlu0 %v1909, 48
  %v1914 = vpop.permute.xlu0 %1913
  %1915 = vrot.lane.b32.xlu0 %v1910, 48
  %v1916 = vpop.permute.xlu0 %1915
  %v1917 = vsel %vm1816, %v1914, %v1916
  %v1919 = vmax.f32 %v1909, %v1917
  %v1920 = vadd.f32 %v1919, %v1822
  %v1921 = vmax.f32 %v1920, 0.0
  %s1922 = scalar_lea.vmem %s5, 160
  %v1923 = vld [vmem:[%s1922] sm:$0xff]
  %v1924 = vld [vmem:[%s1922 + $0x8] sm:$0xff]
  %v1925 = vld [vmem:[%s1922 + $0x10] sm:$0xff]
  %v1926 = vld [vmem:[%s1922 + $0x18] sm:$0xff]
  %v1927 = vld [vmem:[%s1922 + $0x20] sm:$0xff]
  %v1928 = vld [vmem:[%s1922 + $0x28] sm:$0xff]
  %v1929 = vld [vmem:[%s1922 + $0x30] sm:$0xff]
  %v1930 = vld [vmem:[%s1922 + $0x38] sm:$0xff]
  %v1931 = vld [vmem:[%s1922 + $0x40] sm:$0xff]
  %v1932 = vld [vmem:[%s1922 + $0x48] sm:$0xff]
  %v1934 = vsel %vm1836, %v1921, 0
  %1936 = vmatpush.msra.mxu0 0.0
  %1937 = vmatpush.msra.mxu0 0.0
  %1938 = vmatpush.msra.mxu0 0.0
  %1939 = vmatpush.msra.mxu0 0.0
  %1940 = vmatpush.msra.mxu0 0.0
  %1941 = vmatpush.msra.mxu0 0.0
  %1942 = vmatpush.msra.mxu0 %v1932
  %1943 = vmatpush.msra.mxu0 %v1931
  %1944 = vmatpush.msra.mxu0 %v1930
  %1945 = vmatpush.msra.mxu0 %v1929
  %1946 = vmatpush.msra.mxu0 %v1928
  %1947 = vmatpush.msra.mxu0 %v1927
  %1948 = vmatpush.msra.mxu0 %v1926
  %1949 = vmatpush.msra.mxu0 %v1925
  %1950 = vmatpush.msra.mxu0 %v1924
  %1951 = vmatpush.msra.mxu0 %v1923
  %1952 = vmatmul.f32.gmra.mxu0 %v1934
  %v1953 = vpop.f32.mrf.mxu0
  %v1954 = vadd.f32 0.0, %v1953
  %1955 = vdwg.mxu0
  %v1956 = vadd.f32 %v1908, %v1954
  %v1957 = vmax.f32 %v1593, %v1596
  %v1958 = vmax.f32 %v1798, %v1801
  %1961 = vrot.lane.b32.xlu0 %v1957, 48
  %v1962 = vpop.permute.xlu0 %1961
  %1963 = vrot.lane.b32.xlu0 %v1958, 48
  %v1964 = vpop.permute.xlu0 %1963
  %v1965 = vsel %vm1816, %v1962, %v1964
  %v1967 = vmax.f32 %v1957, %v1965
  %v1968 = vadd.f32 %v1967, %v1822
  %v1969 = vmax.f32 %v1968, 0.0
  %s1970 = scalar_lea.vmem %s5, 240
  %v1971 = vld [vmem:[%s1970] sm:$0xff]
  %v1972 = vld [vmem:[%s1970 + $0x8] sm:$0xff]
  %v1973 = vld [vmem:[%s1970 + $0x10] sm:$0xff]
  %v1974 = vld [vmem:[%s1970 + $0x18] sm:$0xff]
  %v1975 = vld [vmem:[%s1970 + $0x20] sm:$0xff]
  %v1976 = vld [vmem:[%s1970 + $0x28] sm:$0xff]
  %v1977 = vld [vmem:[%s1970 + $0x30] sm:$0xff]
  %v1978 = vld [vmem:[%s1970 + $0x38] sm:$0xff]
  %v1979 = vld [vmem:[%s1970 + $0x40] sm:$0xff]
  %v1980 = vld [vmem:[%s1970 + $0x48] sm:$0xff]
  %v1982 = vsel %vm1836, %v1969, 0
  %1984 = vmatpush.msra.mxu0 0.0
  %1985 = vmatpush.msra.mxu0 0.0
  %1986 = vmatpush.msra.mxu0 0.0
  %1987 = vmatpush.msra.mxu0 0.0
  %1988 = vmatpush.msra.mxu0 0.0
  %1989 = vmatpush.msra.mxu0 0.0
  %1990 = vmatpush.msra.mxu0 %v1980
  %1991 = vmatpush.msra.mxu0 %v1979
  %1992 = vmatpush.msra.mxu0 %v1978
  %1993 = vmatpush.msra.mxu0 %v1977
  %1994 = vmatpush.msra.mxu0 %v1976
  %1995 = vmatpush.msra.mxu0 %v1975
  %1996 = vmatpush.msra.mxu0 %v1974
  %1997 = vmatpush.msra.mxu0 %v1973
  %1998 = vmatpush.msra.mxu0 %v1972
  %1999 = vmatpush.msra.mxu0 %v1971
  %2000 = vmatmul.f32.gmra.mxu0 %v1982
  %v2001 = vpop.f32.mrf.mxu0
  %v2002 = vadd.f32 0.0, %v2001
  %2003 = vdwg.mxu0
  %v2004 = vadd.f32 %v1956, %v2002
  %v2005 = vmax.f32 %v2004, 0.0
  %v2006 = vld [vmem:[%s7] sm:$0xff]
  %v2007 = vld [vmem:[%s7 + $0x8] sm:$0xff]
  %v2008 = vld [vmem:[%s7 + $0x10] sm:$0xff]
  %v2009 = vld [vmem:[%s7 + $0x18] sm:$0xff]
  %v2010 = vld [vmem:[%s7 + $0x20] sm:$0xff]
  %v2011 = vld [vmem:[%s7 + $0x28] sm:$0xff]
  %v2012 = vld [vmem:[%s7 + $0x30] sm:$0x3]
  %v2013 = vld [vmem:[%s8] sm:$0x1]
  %v2015 = vperm.slane %v2013, 0
  %vm2017 = vcmask 408576
  %v2019 = vsel %vm2017, %v2005, 0
  %vm2021 = vcmask 1041408
  %v2023 = vsel %vm2021, %v2012, 0
  %2025 = vmatpush.msra.mxu0 0.0
  %2026 = vmatpush.msra.mxu0 0.0
  %2027 = vmatpush.msra.mxu0 0.0
  %2028 = vmatpush.msra.mxu0 0.0
  %2029 = vmatpush.msra.mxu0 0.0
  %2030 = vmatpush.msra.mxu0 0.0
  %2031 = vmatpush.msra.mxu0 0.0
  %2032 = vmatpush.msra.mxu0 0.0
  %2033 = vmatpush.msra.mxu0 0.0
  %2034 = vmatpush.msra.mxu0 %v2023
  %2035 = vmatpush.msra.mxu0 %v2011
  %2036 = vmatpush.msra.mxu0 %v2010
  %2037 = vmatpush.msra.mxu0 %v2009
  %2038 = vmatpush.msra.mxu0 %v2008
  %2039 = vmatpush.msra.mxu0 %v2007
  %2040 = vmatpush.msra.mxu0 %v2006
  %2041 = vmatmul.f32.gmra.mxu0 %v2019
  %v2042 = vpop.f32.mrf.mxu0
  %v2043 = vadd.f32 %v2015, %v2042
  %2044 = vdwg.mxu0
  %vm2045 = vcmask 80896
  %v2046 = vsel %vm2045, %v2043, -inf
  %2047 = vmax.xlane.f32.xlu0 %v2046
  %v2048 = vpop.xlane.xlu0 %2047
  %v2049 = vsub.f32 %v2043, %v2048
  %v2050 = vmul.f32 %v2049, 1.442695
  %v2051 = vpow.pop %v2050
  %v2052 = vsel %vm2045, %v2051, 0.0
  %2053 = vadd.xlane.f32.xlu0 %v2052
  %v2054 = vpop.xlane.xlu0 %2053
  %v2055 = vlog2.pop %v2054
  %v2056 = vmul.f32 %v2055, 0.6931472
  %v2057 = vsub.f32 %v2049, %v2056
  %2058 = vst.msk [vmem:[%s9] sm:$0xff] %vm2045, %v2057
  // Predicated region
  $region38: #{cnnmnist_forward.1} parent=0 // pred_check
    _
  $region39: #{cnnmnist_forward.1} parent=0 // pred_check_branch
    %2060 = sbr.rel (0) target = $region41
  $region40: #{cnnmnist_forward.1} parent=0 // pred_region
    _
  $region41: #{cnnmnist_forward.1} parent=0 // pred_fallthru
    _
  // Predicated region
  $region42: #{cnnmnist_forward.1} parent=0 // pred_check
    _
  $region43: #{cnnmnist_forward.1} parent=0 // pred_check_branch
    %2062 = sbr.rel (0) target = $region45
  $region44: #{cnnmnist_forward.1} parent=0 // pred_region
    _
  $region45: #{cnnmnist_forward.1} parent=0 // pred_fallthru
    _

</llo_original>
